<compile_context>
chip_gen: v6e
topology: v6e:2x2x1
jax: 0.10.0
libtpu: 0.0.40
codegen_flags: <defaults>
</compile_context>

<pallas_src>
import functools
import math

import jax
import jax.numpy as jnp
from jax import lax
from jax.experimental import pallas as pl
from jax.experimental.pallas import tpu as pltpu

# Headroom below v7x's 64 MiB physical VMEM (v5e/v6e have 128 MiB).
_VMEM_LIMIT = 48 * 1024 * 1024


def _pick_tile(dim, preferred):
    """Largest 'nice' tile <= preferred that evenly divides dim."""
    for t in (preferred, 512, 256, 128, 64, 32, 16, 8):
        if t <= dim and dim % t == 0:
            return t
    return dim  # tiny/odd dims: block == full array dim is always legal


# ---------------------------------------------------------------------------
# Kernel 1: tiled matmul + bias (qkv projection). bf16 operands, f32 acc.
# ---------------------------------------------------------------------------
def _linear_kernel(x_ref, w_ref, b_ref, o_ref, acc_ref):
    @pl.when(pl.program_id(2) == 0)
    def _init():
        acc_ref[...] = jnp.zeros_like(acc_ref)

    acc_ref[...] += jnp.dot(x_ref[...], w_ref[...],
                            preferred_element_type=jnp.float32)

    @pl.when(pl.program_id(2) == pl.num_programs(2) - 1)
    def _store():
        # Bias added once to the f32 accumulator in the epilogue.
        o_ref[...] = (acc_ref[...] + b_ref[...]).astype(o_ref.dtype)


def pallas_linear(x2d, w, b, *, out_dtype=jnp.bfloat16, tm=512, tn=512, tk=512):
    M, K = x2d.shape
    Kw, N = w.shape
    assert K == Kw
    tm = _pick_tile(M, tm)
    tn = _pick_tile(N, tn)
    tk = _pick_tile(K, tk)
    grid = (pl.cdiv(M, tm), pl.cdiv(N, tn), pl.cdiv(K, tk))
    return pl.pallas_call(
        _linear_kernel,
        out_shape=jax.ShapeDtypeStruct((M, N), out_dtype),
        grid=grid,
        in_specs=[
            pl.BlockSpec((tm, tk), lambda i, j, k: (i, k)),
            pl.BlockSpec((tk, tn), lambda i, j, k: (k, j)),
            pl.BlockSpec((1, tn), lambda i, j, k: (0, j)),
        ],
        out_specs=pl.BlockSpec((tm, tn), lambda i, j, k: (i, j)),
        scratch_shapes=[pltpu.VMEM((tm, tn), jnp.float32)],
        compiler_params=pltpu.CompilerParams(
            dimension_semantics=("parallel", "parallel", "arbitrary"),
            vmem_limit_bytes=_VMEM_LIMIT),
    )(x2d, w, b.reshape(1, N).astype(jnp.float32))


# ---------------------------------------------------------------------------
# Kernel 2: flash-style SDPA with the output projection fused in.
# Grid (B, S/tq, S/tk); KV axis is the (arbitrary) reduction axis.
# qkv columns are [Q_all | K_all | V_all], heads contiguous within each slab.
# ---------------------------------------------------------------------------
def _flash_mha_kernel(q_ref, k_ref, v_ref, wo_ref, bo_ref, o_ref,
                      m_sc, l_sc, acc_sc, *, num_heads, head_dim):
    ki = pl.program_id(2)

    @pl.when(ki == 0)
    def _init():
        m_sc[...] = jnp.full_like(m_sc, -jnp.inf)
        l_sc[...] = jnp.zeros_like(l_sc)
        acc_sc[...] = jnp.zeros_like(acc_sc)

    qblk = q_ref[0]                       # (tq, d_model) bf16, head h at cols [h*Dh,(h+1)*Dh)
    kblk = k_ref[0]                       # (tk, d_model) bf16
    vblk = v_ref[0]                       # (tk, d_model) bf16
    scale = 1.0 / math.sqrt(head_dim)     # weakly-typed: stays bf16 when folded into q
    contract_last = (((1,), (1,)), ((), ()))   # q @ k^T without a transpose

    # TODO(synk): additive attention-mask / dropout support (module is exercised with mask=None).
    for h in range(num_heads):            # static unroll, H is small
        lo = h * head_dim
        hi = lo + head_dim
        q_h = qblk[:, lo:hi] * scale      # fold 1/sqrt(d_k) into q (tq*Dh elems)
        k_h = kblk[:, lo:hi]
        v_h = vblk[:, lo:hi]
        s = lax.dot_general(q_h, k_h, contract_last,
                            preferred_element_type=jnp.float32)    # (tq, tk) f32
        m_prev = m_sc[:, h:h + 1]
        m_new = jnp.maximum(m_prev, jnp.max(s, axis=-1, keepdims=True))
        alpha = jnp.exp(m_prev - m_new)
        p = jnp.exp(s - m_new)
        l_sc[:, h:h + 1] = alpha * l_sc[:, h:h + 1] + jnp.sum(p, axis=-1, keepdims=True)
        acc_sc[h] = alpha * acc_sc[h] + jnp.dot(
            p.astype(jnp.bfloat16), v_h, preferred_element_type=jnp.float32)
        m_sc[:, h:h + 1] = m_new

    @pl.when(ki == pl.num_programs(2) - 1)
    def _project_and_store():
        # Fused output projection: out = sum_h head_out_h @ w_out[h*Dh:(h+1)*Dh, :] + b_out
        out = None
        for h in range(num_heads):
            lo = h * head_dim
            inv_l = pl.reciprocal(l_sc[:, h:h + 1], approx=True)   # EUP slot
            o_h = (acc_sc[h] * inv_l).astype(jnp.bfloat16)
            contrib = jnp.dot(o_h, wo_ref[lo:lo + head_dim, :],
                              preferred_element_type=jnp.float32)
            out = contrib if out is None else out + contrib
        o_ref[0] = (out + bo_ref[...]).astype(o_ref.dtype)         # lane-dense store


def pallas_flash_mha(qkv, w_out, b_out, *, num_heads, head_dim, tq=256, tk=256):
    B, S, three_d = qkv.shape
    d_model = num_heads * head_dim
    assert three_d == 3 * d_model
    tq = _pick_tile(S, tq)
    tk = _pick_tile(S, tk)
    grid = (B, pl.cdiv(S, tq), pl.cdiv(S, tk))
    kernel = functools.partial(_flash_mha_kernel,
                               num_heads=num_heads, head_dim=head_dim)
    return pl.pallas_call(
        kernel,
        out_shape=jax.ShapeDtypeStruct((B, S, d_model), jnp.float32),
        grid=grid,
        in_specs=[
            # qkv passed three times with slab views (no full 3*d_model block DMA).
            pl.BlockSpec((1, tq, d_model), lambda b, qi, ki: (b, qi, 0)),   # Q slab
            pl.BlockSpec((1, tk, d_model), lambda b, qi, ki: (b, ki, 1)),   # K slab
            pl.BlockSpec((1, tk, d_model), lambda b, qi, ki: (b, ki, 2)),   # V slab
            pl.BlockSpec((d_model, d_model), lambda b, qi, ki: (0, 0)),     # w_out (bf16)
            pl.BlockSpec((1, d_model), lambda b, qi, ki: (0, 0)),           # b_out (f32)
        ],
        out_specs=pl.BlockSpec((1, tq, d_model), lambda b, qi, ki: (b, qi, 0)),
        scratch_shapes=[
            pltpu.VMEM((tq, num_heads), jnp.float32),             # running max per head
            pltpu.VMEM((tq, num_heads), jnp.float32),             # running sum per head
            pltpu.VMEM((num_heads, tq, head_dim), jnp.float32),   # running P@V accumulator
        ],
        compiler_params=pltpu.CompilerParams(
            dimension_semantics=("parallel", "parallel", "arbitrary"),
            vmem_limit_bytes=_VMEM_LIMIT),
    )(qkv, qkv, qkv, w_out, b_out.reshape(1, d_model).astype(jnp.float32))


# ---------------------------------------------------------------------------
# Full MultiheadAttention forward.
# ---------------------------------------------------------------------------
def _qkv_column_perm(num_heads, head_dim):
    """New column j (in [Q_all|K_all|V_all] order) <- original per-head-interleaved column."""
    d_model = num_heads * head_dim
    j = jnp.arange(3 * d_model)
    t = j // d_model          # 0 = q slab, 1 = k slab, 2 = v slab
    r = j % d_model
    h = r // head_dim
    d = r % head_dim
    return h * 3 * head_dim + t * head_dim + d


@functools.partial(jax.jit, static_argnums=2)
def multihead_attention(x, params, num_heads):
    B, S, input_dim = x.shape
    w_qkv, b_qkv, w_out, b_out = params
    d_model = w_out.shape[1]
    head_dim = d_model // num_heads

    # One-time weights-only column reorder (free): per-head interleaved
    # [q_h|k_h|v_h] -> [Q_all|K_all|V_all] with heads contiguous in each slab.
    perm = _qkv_column_perm(num_heads, head_dim)
    w_qkv_r = w_qkv[:, perm].astype(jnp.bfloat16)
    b_qkv_r = b_qkv[perm]

    # qkv projection: bf16 MXU operands, f32 accumulation, bf16 activation out.
    qkv = pallas_linear(x.reshape(B * S, input_dim).astype(jnp.bfloat16),
                        w_qkv_r, b_qkv_r, out_dtype=jnp.bfloat16)
    qkv = qkv.reshape(B, S, 3 * d_model)        # free reshape, no transpose

    # Flash SDPA with the output projection fused into the epilogue.
    out = pallas_flash_mha(qkv, w_out.astype(jnp.bfloat16), b_out,
                           num_heads=num_heads, head_dim=head_dim)
    return out


# Pure-JAX f32 reference for verification (mirrors the PyTorch module exactly).
def reference(x, params, num_heads):
    B, S, input_dim = x.shape
    w_qkv, b_qkv, w_out, b_out = params
    d_model = w_out.shape[1]
    head_dim = d_model // num_heads
    qkv = x @ w_qkv + b_qkv
    qkv = qkv.reshape(B, S, num_heads, 3 * head_dim).transpose(0, 2, 1, 3)
    q, k, v = jnp.split(qkv, 3, axis=-1)
    scaled = jnp.einsum("bhqd,bhkd->bhqk", q, k) / math.sqrt(head_dim)
    attn = jax.nn.softmax(scaled, axis=-1)
    vals = jnp.einsum("bhqk,bhkd->bhqd", attn, v)
    vals = vals.transpose(0, 2, 1, 3).reshape(B, S, d_model)
    return vals @ w_out + b_out


if __name__ == "__main__":
    # Small shapes consistent with the module: (batch, seq, input_dim).
    batch, seq, input_dim = 2, 8, 128
    d_model, num_heads = 128, 4

    key = jax.random.PRNGKey(0)
    kx, k1, k2, k3, k4 = jax.random.split(key, 5)

    x = jax.random.normal(kx, (batch, seq, input_dim), dtype=jnp.float32)

    # Deterministic parameter init (nn.Linear-style uniform fan-in scaling).
    bound1 = 1.0 / math.sqrt(input_dim)
    bound2 = 1.0 / math.sqrt(d_model)
    w_qkv = jax.random.uniform(k1, (input_dim, 3 * d_model), jnp.float32, -bound1, bound1)
    b_qkv = jax.random.uniform(k2, (3 * d_model,), jnp.float32, -bound1, bound1)
    w_out = jax.random.uniform(k3, (d_model, d_model), jnp.float32, -bound2, bound2)
    b_out = jax.random.uniform(k4, (d_model,), jnp.float32, -bound2, bound2)
    params = (w_qkv, b_qkv, w_out, b_out)

    out = multihead_attention(x, params, num_heads)
    out = jax.block_until_ready(out)

    ref = reference(x, params, num_heads)
    assert out.shape == (batch, seq, d_model)
    # Tolerance accounts for bf16 MXU operands + the approx (EUP) reciprocal.
    assert jnp.allclose(out, ref, atol=2e-2, rtol=2e-2), \
        float(jnp.max(jnp.abs(out - ref)))

    print("KERNEL_OK")
</pallas_src>

<mosaic_0001>
module attributes {stable_mosaic.version = 11 : i64} {
  func.func @_linear_kernel(%arg0: i32, %arg1: i32, %arg2: i32, %arg3: memref<16x128xbf16, #tpu.memory_space<vmem>>, %arg4: memref<128x128xbf16, #tpu.memory_space<vmem>>, %arg5: memref<1x128xf32, #tpu.memory_space<vmem>>, %arg6: memref<16x128xbf16, #tpu.memory_space<vmem>>, %arg7: memref<16x128xf32, #tpu.memory_space<vmem>>) attributes {dimension_semantics = [#tpu.dimension_semantics<parallel>, #tpu.dimension_semantics<parallel>, #tpu.dimension_semantics<arbitrary>], iteration_bounds = array<i64: 1, 3, 1>, scalar_prefetch = 0 : i64, scratch_operands = 1 : i64, tpu.core_type = #tpu.core_type<tc>, window_params = [{transform_indices = @transform_0, window_bounds = array<i64: 16, 128>}, {transform_indices = @transform_1, window_bounds = array<i64: 128, 128>}, {transform_indices = @transform_2, window_bounds = array<i64: 1, 128>}, {transform_indices = @transform_3, window_bounds = array<i64: 16, 128>}]} {
    %c0_i32 = arith.constant 0 : i32
    %0 = arith.cmpi eq, %arg2, %c0_i32 : i32
    %1 = arith.extui %0 : i1 to i32
    %c0_i32_0 = arith.constant 0 : i32
    %2 = arith.cmpi ne, %1, %c0_i32_0 : i32
    scf.if %2 {
      %cst_10 = arith.constant 0.000000e+00 : f32
      %12 = vector.broadcast %cst_10 : f32 to vector<16x128xf32>
      %c0_11 = arith.constant 0 : index
      %c0_12 = arith.constant 0 : index
      %13 = vector.load %arg7[%c0_11, %c0_12] : memref<16x128xf32, #tpu.memory_space<vmem>>, vector<16x128xf32>
      tpu.vector_store %arg7[%c0_11, %c0_12], %12 {strides = array<i32>} : memref<16x128xf32, #tpu.memory_space<vmem>>, vector<16x128xf32>,
    } else {
    }
    %c0 = arith.constant 0 : index
    %c0_1 = arith.constant 0 : index
    %3 = vector.load %arg7[%c0, %c0_1] : memref<16x128xf32, #tpu.memory_space<vmem>>, vector<16x128xf32>
    %c0_2 = arith.constant 0 : index
    %c0_3 = arith.constant 0 : index
    %4 = vector.load %arg3[%c0_2, %c0_3] : memref<16x128xbf16, #tpu.memory_space<vmem>>, vector<16x128xbf16>
    %c0_4 = arith.constant 0 : index
    %c0_5 = arith.constant 0 : index
    %5 = vector.load %arg4[%c0_4, %c0_5] : memref<128x128xbf16, #tpu.memory_space<vmem>>, vector<128x128xbf16>
    %cst = arith.constant dense<0.000000e+00> : vector<16x128xf32>
    %6 = tpu.matmul %4, %5, %cst {dimension_numbers = #tpu.dot_dimension_numbers<[1], [0], [0], [1], [0, 0, 1, 1], [], []>} : vector<16x128xbf16>, vector<128x128xbf16>, vector<16x128xf32> -> vector<16x128xf32>
    %7 = arith.addf %3, %6 : vector<16x128xf32>
    %c0_6 = arith.constant 0 : index
    %c0_7 = arith.constant 0 : index
    %8 = vector.load %arg7[%c0_6, %c0_7] : memref<16x128xf32, #tpu.memory_space<vmem>>, vector<16x128xf32>
    tpu.vector_store %arg7[%c0_6, %c0_7], %7 {strides = array<i32>} : memref<16x128xf32, #tpu.memory_space<vmem>>, vector<16x128xf32>,
    %c0_i32_8 = arith.constant 0 : i32
    %9 = arith.cmpi eq, %arg2, %c0_i32_8 : i32
    %10 = arith.extui %9 : i1 to i32
    %c0_i32_9 = arith.constant 0 : i32
    %11 = arith.cmpi ne, %10, %c0_i32_9 : i32
    scf.if %11 {
      %c0_10 = arith.constant 0 : index
      %c0_11 = arith.constant 0 : index
      %12 = vector.load %arg7[%c0_10, %c0_11] : memref<16x128xf32, #tpu.memory_space<vmem>>, vector<16x128xf32>
      %c0_12 = arith.constant 0 : index
      %c0_13 = arith.constant 0 : index
      %13 = vector.load %arg5[%c0_12, %c0_13] : memref<1x128xf32, #tpu.memory_space<vmem>>, vector<1x128xf32>
      %14 = vector.broadcast %13 : vector<1x128xf32> to vector<16x128xf32>
      %15 = arith.addf %12, %14 : vector<16x128xf32>
      %16 = arith.truncf %15 : vector<16x128xf32> to vector<16x128xbf16>
      %c0_14 = arith.constant 0 : index
      %c0_15 = arith.constant 0 : index
      %17 = vector.load %arg6[%c0_14, %c0_15] : memref<16x128xbf16, #tpu.memory_space<vmem>>, vector<16x128xbf16>
      tpu.vector_store %arg6[%c0_14, %c0_15], %16 {strides = array<i32>} : memref<16x128xbf16, #tpu.memory_space<vmem>>, vector<16x128xbf16>,
    } else {
    }
    return
  }
  func.func @transform_0(%arg0: i32, %arg1: i32, %arg2: i32) -> (i32, i32) {
    %c0_i32 = arith.constant 0 : i32
    return %arg0, %arg2 : i32, i32
  }
  func.func @transform_1(%arg0: i32, %arg1: i32, %arg2: i32) -> (i32, i32) {
    %c0_i32 = arith.constant 0 : i32
    return %arg2, %arg1 : i32, i32
  }
  func.func @transform_2(%arg0: i32, %arg1: i32, %arg2: i32) -> (i32, i32) {
    %c0_i32 = arith.constant 0 : i32
    %c0_i32_0 = arith.constant 0 : i32
    return %c0_i32, %arg1 : i32, i32
  }
  func.func @transform_3(%arg0: i32, %arg1: i32, %arg2: i32) -> (i32, i32) {
    %c0_i32 = arith.constant 0 : i32
    return %arg0, %arg1 : i32, i32
  }
}

module attributes {stable_mosaic.version = 11 : i64} {
  func.func @_flash_mha_kernel(%arg0: i32, %arg1: i32, %arg2: i32, %arg3: memref<1x8x128xbf16, #tpu.memory_space<vmem>>, %arg4: memref<1x8x128xbf16, #tpu.memory_space<vmem>>, %arg5: memref<1x8x128xbf16, #tpu.memory_space<vmem>>, %arg6: memref<128x128xbf16, #tpu.memory_space<vmem>>, %arg7: memref<1x128xf32, #tpu.memory_space<vmem>>, %arg8: memref<1x8x128xf32, #tpu.memory_space<vmem>>, %arg9: memref<8x4xf32, #tpu.memory_space<vmem>>, %arg10: memref<8x4xf32, #tpu.memory_space<vmem>>, %arg11: memref<4x8x32xf32, #tpu.memory_space<vmem>>) attributes {dimension_semantics = [#tpu.dimension_semantics<parallel>, #tpu.dimension_semantics<parallel>, #tpu.dimension_semantics<arbitrary>], iteration_bounds = array<i64: 2, 1, 1>, scalar_prefetch = 0 : i64, scratch_operands = 3 : i64, tpu.core_type = #tpu.core_type<tc>, window_params = [{transform_indices = @transform_0, window_bounds = array<i64: 1, 8, 128>}, {transform_indices = @transform_1, window_bounds = array<i64: 1, 8, 128>}, {transform_indices = @transform_2, window_bounds = array<i64: 1, 8, 128>}, {pipeline_mode = #tpu.pipeline_mode<synchronous>, transform_indices = @transform_3, window_bounds = array<i64: 128, 128>}, {pipeline_mode = #tpu.pipeline_mode<synchronous>, transform_indices = @transform_4, window_bounds = array<i64: 1, 128>}, {transform_indices = @transform_5, window_bounds = array<i64: 1, 8, 128>}]} {
    %c0_i32 = arith.constant 0 : i32
    %0 = arith.cmpi eq, %arg2, %c0_i32 : i32
    %1 = arith.extui %0 : i1 to i32
    %c0_i32_0 = arith.constant 0 : i32
    %2 = arith.cmpi ne, %1, %c0_i32_0 : i32
    scf.if %2 {
      %cst_83 = arith.constant 0xFF800000 : f32
      %140 = vector.broadcast %cst_83 : f32 to vector<8x4xf32>
      %c0_84 = arith.constant 0 : index
      %c0_85 = arith.constant 0 : index
      %141 = vector.load %arg9[%c0_84, %c0_85] : memref<8x4xf32, #tpu.memory_space<vmem>>, vector<8x4xf32>
      tpu.vector_store %arg9[%c0_84, %c0_85], %140 {strides = array<i32>} : memref<8x4xf32, #tpu.memory_space<vmem>>, vector<8x4xf32>,
      %cst_86 = arith.constant 0.000000e+00 : f32
      %142 = vector.broadcast %cst_86 : f32 to vector<8x4xf32>
      %c0_87 = arith.constant 0 : index
      %c0_88 = arith.constant 0 : index
      %143 = vector.load %arg10[%c0_87, %c0_88] : memref<8x4xf32, #tpu.memory_space<vmem>>, vector<8x4xf32>
      tpu.vector_store %arg10[%c0_87, %c0_88], %142 {strides = array<i32>} : memref<8x4xf32, #tpu.memory_space<vmem>>, vector<8x4xf32>,
      %cst_89 = arith.constant 0.000000e+00 : f32
      %144 = vector.broadcast %cst_89 : f32 to vector<4x8x32xf32>
      %c0_90 = arith.constant 0 : index
      %c0_91 = arith.constant 0 : index
      %c0_92 = arith.constant 0 : index
      %145 = vector.load %arg11[%c0_90, %c0_91, %c0_92] : memref<4x8x32xf32, #tpu.memory_space<vmem>>, vector<4x8x32xf32>
      tpu.vector_store %arg11[%c0_90, %c0_91, %c0_92], %144 {strides = array<i32>} : memref<4x8x32xf32, #tpu.memory_space<vmem>>, vector<4x8x32xf32>,
    } else {
    }
    %c0 = arith.constant 0 : index
    %c0_1 = arith.constant 0 : index
    %c0_2 = arith.constant 0 : index
    %3 = vector.load %arg3[%c0, %c0_1, %c0_2] : memref<1x8x128xbf16, #tpu.memory_space<vmem>>, vector<1x8x128xbf16>
    %4 = vector.shape_cast %3 : vector<1x8x128xbf16> to vector<8x128xbf16>
    %c0_3 = arith.constant 0 : index
    %c0_4 = arith.constant 0 : index
    %c0_5 = arith.constant 0 : index
    %5 = vector.load %arg4[%c0_3, %c0_4, %c0_5] : memref<1x8x128xbf16, #tpu.memory_space<vmem>>, vector<1x8x128xbf16>
    %6 = vector.shape_cast %5 : vector<1x8x128xbf16> to vector<8x128xbf16>
    %c0_6 = arith.constant 0 : index
    %c0_7 = arith.constant 0 : index
    %c0_8 = arith.constant 0 : index
    %7 = vector.load %arg5[%c0_6, %c0_7, %c0_8] : memref<1x8x128xbf16, #tpu.memory_space<vmem>>, vector<1x8x128xbf16>
    %8 = vector.shape_cast %7 : vector<1x8x128xbf16> to vector<8x128xbf16>
    %9 = vector.extract_strided_slice %4 {offsets = [0, 0], sizes = [8, 32], strides = [1, 1]} : vector<8x128xbf16> to vector<8x32xbf16>
    %cst = arith.constant 1.767580e-01 : bf16
    %10 = vector.broadcast %cst : bf16 to vector<8x32xbf16>
    %11 = arith.mulf %9, %10 : vector<8x32xbf16>
    %12 = vector.extract_strided_slice %6 {offsets = [0, 0], sizes = [8, 32], strides = [1, 1]} : vector<8x128xbf16> to vector<8x32xbf16>
    %13 = vector.extract_strided_slice %8 {offsets = [0, 0], sizes = [8, 32], strides = [1, 1]} : vector<8x128xbf16> to vector<8x32xbf16>
    %cst_9 = arith.constant dense<0.000000e+00> : vector<8x8xf32>
    %14 = tpu.matmul %11, %12, %cst_9 {dimension_numbers = #tpu.dot_dimension_numbers<[1], [1], [0], [0], [0, 0, 1, 0], [], []>} : vector<8x32xbf16>, vector<8x32xbf16>, vector<8x8xf32> -> vector<8x8xf32>
    %c0_10 = arith.constant 0 : index
    %c0_11 = arith.constant 0 : index
    %15 = vector.load %arg9[%c0_10, %c0_11] : memref<8x4xf32, #tpu.memory_space<vmem>>, vector<8x1xf32>
    %cst_12 = arith.constant dense<0xFF800000> : vector<8xf32>
    %16 = vector.multi_reduction <maximumf>, %14, %cst_12 [1] : vector<8x8xf32> to vector<8xf32>
    %17 = vector.shape_cast %16 : vector<8xf32> to vector<8x1xf32>
    %18 = arith.maximumf %15, %17 : vector<8x1xf32>
    %19 = arith.subf %15, %18 : vector<8x1xf32>
    %20 = math.exp %19 : vector<8x1xf32>
    %21 = vector.broadcast %18 : vector<8x1xf32> to vector<8x8xf32>
    %22 = arith.subf %14, %21 : vector<8x8xf32>
    %23 = math.exp %22 : vector<8x8xf32>
    %c0_13 = arith.constant 0 : index
    %c0_14 = arith.constant 0 : index
    %24 = vector.load %arg10[%c0_13, %c0_14] : memref<8x4xf32, #tpu.memory_space<vmem>>, vector<8x1xf32>
    %25 = arith.mulf %20, %24 : vector<8x1xf32>
    %cst_15 = arith.constant dense<0.000000e+00> : vector<8xf32>
    %26 = vector.multi_reduction <add>, %23, %cst_15 [1] : vector<8x8xf32> to vector<8xf32>
    %27 = vector.shape_cast %26 : vector<8xf32> to vector<8x1xf32>
    %28 = arith.addf %25, %27 : vector<8x1xf32>
    %c0_16 = arith.constant 0 : index
    %c0_17 = arith.constant 0 : index
    %29 = vector.load %arg10[%c0_16, %c0_17] : memref<8x4xf32, #tpu.memory_space<vmem>>, vector<8x1xf32>
    tpu.vector_store %arg10[%c0_16, %c0_17], %28 {strides = array<i32>} : memref<8x4xf32, #tpu.memory_space<vmem>>, vector<8x1xf32>,
    %c0_18 = arith.constant 0 : index
    %c0_19 = arith.constant 0 : index
    %c0_20 = arith.constant 0 : index
    %30 = vector.load %arg11[%c0_18, %c0_19, %c0_20] : memref<4x8x32xf32, #tpu.memory_space<vmem>>, vector<1x8x32xf32>
    %31 = vector.shape_cast %30 : vector<1x8x32xf32> to vector<8x32xf32>
    %32 = vector.broadcast %20 : vector<8x1xf32> to vector<8x32xf32>
    %33 = arith.mulf %32, %31 : vector<8x32xf32>
    %34 = arith.truncf %23 : vector<8x8xf32> to vector<8x8xbf16>
    %cst_21 = arith.constant dense<0.000000e+00> : vector<8x32xf32>
    %35 = tpu.matmul %34, %13, %cst_21 {dimension_numbers = #tpu.dot_dimension_numbers<[1], [0], [0], [1], [0, 0, 1, 1], [], []>} : vector<8x8xbf16>, vector<8x32xbf16>, vector<8x32xf32> -> vector<8x32xf32>
    %36 = arith.addf %33, %35 : vector<8x32xf32>
    %c0_22 = arith.constant 0 : index
    %c0_23 = arith.constant 0 : index
    %c0_24 = arith.constant 0 : index
    %37 = vector.load %arg11[%c0_22, %c0_23, %c0_24] : memref<4x8x32xf32, #tpu.memory_space<vmem>>, vector<1x8x32xf32>
    %38 = vector.shape_cast %37 : vector<1x8x32xf32> to vector<8x32xf32>
    %39 = vector.shape_cast %36 : vector<8x32xf32> to vector<1x8x32xf32>
    tpu.vector_store %arg11[%c0_22, %c0_23, %c0_24], %39 {strides = array<i32>} : memref<4x8x32xf32, #tpu.memory_space<vmem>>, vector<1x8x32xf32>,
    %c0_25 = arith.constant 0 : index
    %c0_26 = arith.constant 0 : index
    %40 = vector.load %arg9[%c0_25, %c0_26] : memref<8x4xf32, #tpu.memory_space<vmem>>, vector<8x1xf32>
    tpu.vector_store %arg9[%c0_25, %c0_26], %18 {strides = array<i32>} : memref<8x4xf32, #tpu.memory_space<vmem>>, vector<8x1xf32>,
    %41 = vector.extract_strided_slice %4 {offsets = [0, 32], sizes = [8, 32], strides = [1, 1]} : vector<8x128xbf16> to vector<8x32xbf16>
    %cst_27 = arith.constant 1.767580e-01 : bf16
    %42 = vector.broadcast %cst_27 : bf16 to vector<8x32xbf16>
    %43 = arith.mulf %41, %42 : vector<8x32xbf16>
    %44 = vector.extract_strided_slice %6 {offsets = [0, 32], sizes = [8, 32], strides = [1, 1]} : vector<8x128xbf16> to vector<8x32xbf16>
    %45 = vector.extract_strided_slice %8 {offsets = [0, 32], sizes = [8, 32], strides = [1, 1]} : vector<8x128xbf16> to vector<8x32xbf16>
    %cst_28 = arith.constant dense<0.000000e+00> : vector<8x8xf32>
    %46 = tpu.matmul %43, %44, %cst_28 {dimension_numbers = #tpu.dot_dimension_numbers<[1], [1], [0], [0], [0, 0, 1, 0], [], []>} : vector<8x32xbf16>, vector<8x32xbf16>, vector<8x8xf32> -> vector<8x8xf32>
    %c0_29 = arith.constant 0 : index
    %c1 = arith.constant 1 : index
    %47 = vector.load %arg9[%c0_29, %c1] : memref<8x4xf32, #tpu.memory_space<vmem>>, vector<8x1xf32>
    %cst_30 = arith.constant dense<0xFF800000> : vector<8xf32>
    %48 = vector.multi_reduction <maximumf>, %46, %cst_30 [1] : vector<8x8xf32> to vector<8xf32>
    %49 = vector.shape_cast %48 : vector<8xf32> to vector<8x1xf32>
    %50 = arith.maximumf %47, %49 : vector<8x1xf32>
    %51 = arith.subf %47, %50 : vector<8x1xf32>
    %52 = math.exp %51 : vector<8x1xf32>
    %53 = vector.broadcast %50 : vector<8x1xf32> to vector<8x8xf32>
    %54 = arith.subf %46, %53 : vector<8x8xf32>
    %55 = math.exp %54 : vector<8x8xf32>
    %c0_31 = arith.constant 0 : index
    %c1_32 = arith.constant 1 : index
    %56 = vector.load %arg10[%c0_31, %c1_32] : memref<8x4xf32, #tpu.memory_space<vmem>>, vector<8x1xf32>
    %57 = arith.mulf %52, %56 : vector<8x1xf32>
    %cst_33 = arith.constant dense<0.000000e+00> : vector<8xf32>
    %58 = vector.multi_reduction <add>, %55, %cst_33 [1] : vector<8x8xf32> to vector<8xf32>
    %59 = vector.shape_cast %58 : vector<8xf32> to vector<8x1xf32>
    %60 = arith.addf %57, %59 : vector<8x1xf32>
    %c0_34 = arith.constant 0 : index
    %c1_35 = arith.constant 1 : index
    %61 = vector.load %arg10[%c0_34, %c1_35] : memref<8x4xf32, #tpu.memory_space<vmem>>, vector<8x1xf32>
    tpu.vector_store %arg10[%c0_34, %c1_35], %60 {strides = array<i32>} : memref<8x4xf32, #tpu.memory_space<vmem>>, vector<8x1xf32>,
    %c1_36 = arith.constant 1 : index
    %c0_37 = arith.constant 0 : index
    %c0_38 = arith.constant 0 : index
    %62 = vector.load %arg11[%c1_36, %c0_37, %c0_38] : memref<4x8x32xf32, #tpu.memory_space<vmem>>, vector<1x8x32xf32>
    %63 = vector.shape_cast %62 : vector<1x8x32xf32> to vector<8x32xf32>
    %64 = vector.broadcast %52 : vector<8x1xf32> to vector<8x32xf32>
    %65 = arith.mulf %64, %63 : vector<8x32xf32>
    %66 = arith.truncf %55 : vector<8x8xf32> to vector<8x8xbf16>
    %cst_39 = arith.constant dense<0.000000e+00> : vector<8x32xf32>
    %67 = tpu.matmul %66, %45, %cst_39 {dimension_numbers = #tpu.dot_dimension_numbers<[1], [0], [0], [1], [0, 0, 1, 1], [], []>} : vector<8x8xbf16>, vector<8x32xbf16>, vector<8x32xf32> -> vector<8x32xf32>
    %68 = arith.addf %65, %67 : vector<8x32xf32>
    %c1_40 = arith.constant 1 : index
    %c0_41 = arith.constant 0 : index
    %c0_42 = arith.constant 0 : index
    %69 = vector.load %arg11[%c1_40, %c0_41, %c0_42] : memref<4x8x32xf32, #tpu.memory_space<vmem>>, vector<1x8x32xf32>
    %70 = vector.shape_cast %69 : vector<1x8x32xf32> to vector<8x32xf32>
    %71 = vector.shape_cast %68 : vector<8x32xf32> to vector<1x8x32xf32>
    tpu.vector_store %arg11[%c1_40, %c0_41, %c0_42], %71 {strides = array<i32>} : memref<4x8x32xf32, #tpu.memory_space<vmem>>, vector<1x8x32xf32>,
    %c0_43 = arith.constant 0 : index
    %c1_44 = arith.constant 1 : index
    %72 = vector.load %arg9[%c0_43, %c1_44] : memref<8x4xf32, #tpu.memory_space<vmem>>, vector<8x1xf32>
    tpu.vector_store %arg9[%c0_43, %c1_44], %50 {strides = array<i32>} : memref<8x4xf32, #tpu.memory_space<vmem>>, vector<8x1xf32>,
    %73 = vector.extract_strided_slice %4 {offsets = [0, 64], sizes = [8, 32], strides = [1, 1]} : vector<8x128xbf16> to vector<8x32xbf16>
    %cst_45 = arith.constant 1.767580e-01 : bf16
    %74 = vector.broadcast %cst_45 : bf16 to vector<8x32xbf16>
    %75 = arith.mulf %73, %74 : vector<8x32xbf16>
    %76 = vector.extract_strided_slice %6 {offsets = [0, 64], sizes = [8, 32], strides = [1, 1]} : vector<8x128xbf16> to vector<8x32xbf16>
    %77 = vector.extract_strided_slice %8 {offsets = [0, 64], sizes = [8, 32], strides = [1, 1]} : vector<8x128xbf16> to vector<8x32xbf16>
    %cst_46 = arith.constant dense<0.000000e+00> : vector<8x8xf32>
    %78 = tpu.matmul %75, %76, %cst_46 {dimension_numbers = #tpu.dot_dimension_numbers<[1], [1], [0], [0], [0, 0, 1, 0], [], []>} : vector<8x32xbf16>, vector<8x32xbf16>, vector<8x8xf32> -> vector<8x8xf32>
    %c0_47 = arith.constant 0 : index
    %c2 = arith.constant 2 : index
    %79 = vector.load %arg9[%c0_47, %c2] : memref<8x4xf32, #tpu.memory_space<vmem>>, vector<8x1xf32>
    %cst_48 = arith.constant dense<0xFF800000> : vector<8xf32>
    %80 = vector.multi_reduction <maximumf>, %78, %cst_48 [1] : vector<8x8xf32> to vector<8xf32>
    %81 = vector.shape_cast %80 : vector<8xf32> to vector<8x1xf32>
    %82 = arith.maximumf %79, %81 : vector<8x1xf32>
    %83 = arith.subf %79, %82 : vector<8x1xf32>
    %84 = math.exp %83 : vector<8x1xf32>
    %85 = vector.broadcast %82 : vector<8x1xf32> to vector<8x8xf32>
    %86 = arith.subf %78, %85 : vector<8x8xf32>
    %87 = math.exp %86 : vector<8x8xf32>
    %c0_49 = arith.constant 0 : index
    %c2_50 = arith.constant 2 : index
    %88 = vector.load %arg10[%c0_49, %c2_50] : memref<8x4xf32, #tpu.memory_space<vmem>>, vector<8x1xf32>
    %89 = arith.mulf %84, %88 : vector<8x1xf32>
    %cst_51 = arith.constant dense<0.000000e+00> : vector<8xf32>
    %90 = vector.multi_reduction <add>, %87, %cst_51 [1] : vector<8x8xf32> to vector<8xf32>
    %91 = vector.shape_cast %90 : vector<8xf32> to vector<8x1xf32>
    %92 = arith.addf %89, %91 : vector<8x1xf32>
    %c0_52 = arith.constant 0 : index
    %c2_53 = arith.constant 2 : index
    %93 = vector.load %arg10[%c0_52, %c2_53] : memref<8x4xf32, #tpu.memory_space<vmem>>, vector<8x1xf32>
    tpu.vector_store %arg10[%c0_52, %c2_53], %92 {strides = array<i32>} : memref<8x4xf32, #tpu.memory_space<vmem>>, vector<8x1xf32>,
    %c2_54 = arith.constant 2 : index
    %c0_55 = arith.constant 0 : index
    %c0_56 = arith.constant 0 : index
    %94 = vector.load %arg11[%c2_54, %c0_55, %c0_56] : memref<4x8x32xf32, #tpu.memory_space<vmem>>, vector<1x8x32xf32>
    %95 = vector.shape_cast %94 : vector<1x8x32xf32> to vector<8x32xf32>
    %96 = vector.broadcast %84 : vector<8x1xf32> to vector<8x32xf32>
    %97 = arith.mulf %96, %95 : vector<8x32xf32>
    %98 = arith.truncf %87 : vector<8x8xf32> to vector<8x8xbf16>
    %cst_57 = arith.constant dense<0.000000e+00> : vector<8x32xf32>
    %99 = tpu.matmul %98, %77, %cst_57 {dimension_numbers = #tpu.dot_dimension_numbers<[1], [0], [0], [1], [0, 0, 1, 1], [], []>} : vector<8x8xbf16>, vector<8x32xbf16>, vector<8x32xf32> -> vector<8x32xf32>
    %100 = arith.addf %97, %99 : vector<8x32xf32>
    %c2_58 = arith.constant 2 : index
    %c0_59 = arith.constant 0 : index
    %c0_60 = arith.constant 0 : index
    %101 = vector.load %arg11[%c2_58, %c0_59, %c0_60] : memref<4x8x32xf32, #tpu.memory_space<vmem>>, vector<1x8x32xf32>
    %102 = vector.shape_cast %101 : vector<1x8x32xf32> to vector<8x32xf32>
    %103 = vector.shape_cast %100 : vector<8x32xf32> to vector<1x8x32xf32>
    tpu.vector_store %arg11[%c2_58, %c0_59, %c0_60], %103 {strides = array<i32>} : memref<4x8x32xf32, #tpu.memory_space<vmem>>, vector<1x8x32xf32>,
    %c0_61 = arith.constant 0 : index
    %c2_62 = arith.constant 2 : index
    %104 = vector.load %arg9[%c0_61, %c2_62] : memref<8x4xf32, #tpu.memory_space<vmem>>, vector<8x1xf32>
    tpu.vector_store %arg9[%c0_61, %c2_62], %82 {strides = array<i32>} : memref<8x4xf32, #tpu.memory_space<vmem>>, vector<8x1xf32>,
    %105 = vector.extract_strided_slice %4 {offsets = [0, 96], sizes = [8, 32], strides = [1, 1]} : vector<8x128xbf16> to vector<8x32xbf16>
    %cst_63 = arith.constant 1.767580e-01 : bf16
    %106 = vector.broadcast %cst_63 : bf16 to vector<8x32xbf16>
    %107 = arith.mulf %105, %106 : vector<8x32xbf16>
    %108 = vector.extract_strided_slice %6 {offsets = [0, 96], sizes = [8, 32], strides = [1, 1]} : vector<8x128xbf16> to vector<8x32xbf16>
    %109 = vector.extract_strided_slice %8 {offsets = [0, 96], sizes = [8, 32], strides = [1, 1]} : vector<8x128xbf16> to vector<8x32xbf16>
    %cst_64 = arith.constant dense<0.000000e+00> : vector<8x8xf32>
    %110 = tpu.matmul %107, %108, %cst_64 {dimension_numbers = #tpu.dot_dimension_numbers<[1], [1], [0], [0], [0, 0, 1, 0], [], []>} : vector<8x32xbf16>, vector<8x32xbf16>, vector<8x8xf32> -> vector<8x8xf32>
    %c0_65 = arith.constant 0 : index
    %c3 = arith.constant 3 : index
    %111 = vector.load %arg9[%c0_65, %c3] : memref<8x4xf32, #tpu.memory_space<vmem>>, vector<8x1xf32>
    %cst_66 = arith.constant dense<0xFF800000> : vector<8xf32>
    %112 = vector.multi_reduction <maximumf>, %110, %cst_66 [1] : vector<8x8xf32> to vector<8xf32>
    %113 = vector.shape_cast %112 : vector<8xf32> to vector<8x1xf32>
    %114 = arith.maximumf %111, %113 : vector<8x1xf32>
    %115 = arith.subf %111, %114 : vector<8x1xf32>
    %116 = math.exp %115 : vector<8x1xf32>
    %117 = vector.broadcast %114 : vector<8x1xf32> to vector<8x8xf32>
    %118 = arith.subf %110, %117 : vector<8x8xf32>
    %119 = math.exp %118 : vector<8x8xf32>
    %c0_67 = arith.constant 0 : index
    %c3_68 = arith.constant 3 : index
    %120 = vector.load %arg10[%c0_67, %c3_68] : memref<8x4xf32, #tpu.memory_space<vmem>>, vector<8x1xf32>
    %121 = arith.mulf %116, %120 : vector<8x1xf32>
    %cst_69 = arith.constant dense<0.000000e+00> : vector<8xf32>
    %122 = vector.multi_reduction <add>, %119, %cst_69 [1] : vector<8x8xf32> to vector<8xf32>
    %123 = vector.shape_cast %122 : vector<8xf32> to vector<8x1xf32>
    %124 = arith.addf %121, %123 : vector<8x1xf32>
    %c0_70 = arith.constant 0 : index
    %c3_71 = arith.constant 3 : index
    %125 = vector.load %arg10[%c0_70, %c3_71] : memref<8x4xf32, #tpu.memory_space<vmem>>, vector<8x1xf32>
    tpu.vector_store %arg10[%c0_70, %c3_71], %124 {strides = array<i32>} : memref<8x4xf32, #tpu.memory_space<vmem>>, vector<8x1xf32>,
    %c3_72 = arith.constant 3 : index
    %c0_73 = arith.constant 0 : index
    %c0_74 = arith.constant 0 : index
    %126 = vector.load %arg11[%c3_72, %c0_73, %c0_74] : memref<4x8x32xf32, #tpu.memory_space<vmem>>, vector<1x8x32xf32>
    %127 = vector.shape_cast %126 : vector<1x8x32xf32> to vector<8x32xf32>
    %128 = vector.broadcast %116 : vector<8x1xf32> to vector<8x32xf32>
    %129 = arith.mulf %128, %127 : vector<8x32xf32>
    %130 = arith.truncf %119 : vector<8x8xf32> to vector<8x8xbf16>
    %cst_75 = arith.constant dense<0.000000e+00> : vector<8x32xf32>
    %131 = tpu.matmul %130, %109, %cst_75 {dimension_numbers = #tpu.dot_dimension_numbers<[1], [0], [0], [1], [0, 0, 1, 1], [], []>} : vector<8x8xbf16>, vector<8x32xbf16>, vector<8x32xf32> -> vector<8x32xf32>
    %132 = arith.addf %129, %131 : vector<8x32xf32>
    %c3_76 = arith.constant 3 : index
    %c0_77 = arith.constant 0 : index
    %c0_78 = arith.constant 0 : index
    %133 = vector.load %arg11[%c3_76, %c0_77, %c0_78] : memref<4x8x32xf32, #tpu.memory_space<vmem>>, vector<1x8x32xf32>
    %134 = vector.shape_cast %133 : vector<1x8x32xf32> to vector<8x32xf32>
    %135 = vector.shape_cast %132 : vector<8x32xf32> to vector<1x8x32xf32>
    tpu.vector_store %arg11[%c3_76, %c0_77, %c0_78], %135 {strides = array<i32>} : memref<4x8x32xf32, #tpu.memory_space<vmem>>, vector<1x8x32xf32>,
    %c0_79 = arith.constant 0 : index
    %c3_80 = arith.constant 3 : index
    %136 = vector.load %arg9[%c0_79, %c3_80] : memref<8x4xf32, #tpu.memory_space<vmem>>, vector<8x1xf32>
    tpu.vector_store %arg9[%c0_79, %c3_80], %114 {strides = array<i32>} : memref<8x4xf32, #tpu.memory_space<vmem>>, vector<8x1xf32>,
    %c0_i32_81 = arith.constant 0 : i32
    %137 = arith.cmpi eq, %arg2, %c0_i32_81 : i32
    %138 = arith.extui %137 : i1 to i32
    %c0_i32_82 = arith.constant 0 : i32
    %139 = arith.cmpi ne, %138, %c0_i32_82 : i32
    scf.if %139 {
      %c0_83 = arith.constant 0 : index
      %c0_84 = arith.constant 0 : index
      %140 = vector.load %arg10[%c0_83, %c0_84] : memref<8x4xf32, #tpu.memory_space<vmem>>, vector<8x1xf32>
      %141 = tpu.reciprocal %140 {approx = true} : vector<8x1xf32> -> vector<8x1xf32>
      %c0_85 = arith.constant 0 : index
      %c0_86 = arith.constant 0 : index
      %c0_87 = arith.constant 0 : index
      %142 = vector.load %arg11[%c0_85, %c0_86, %c0_87] : memref<4x8x32xf32, #tpu.memory_space<vmem>>, vector<1x8x32xf32>
      %143 = vector.shape_cast %142 : vector<1x8x32xf32> to vector<8x32xf32>
      %144 = vector.broadcast %141 : vector<8x1xf32> to vector<8x32xf32>
      %145 = arith.mulf %143, %144 : vector<8x32xf32>
      %146 = arith.truncf %145 : vector<8x32xf32> to vector<8x32xbf16>
      %c0_88 = arith.constant 0 : index
      %c0_89 = arith.constant 0 : index
      %147 = vector.load %arg6[%c0_88, %c0_89] : memref<128x128xbf16, #tpu.memory_space<vmem>>, vector<32x128xbf16>
      %cst_90 = arith.constant dense<0.000000e+00> : vector<8x128xf32>
      %148 = tpu.matmul %146, %147, %cst_90 {dimension_numbers = #tpu.dot_dimension_numbers<[1], [0], [0], [1], [0, 0, 1, 1], [], []>} : vector<8x32xbf16>, vector<32x128xbf16>, vector<8x128xf32> -> vector<8x128xf32>
      %c0_91 = arith.constant 0 : index
      %c1_92 = arith.constant 1 : index
      %149 = vector.load %arg10[%c0_91, %c1_92] : memref<8x4xf32, #tpu.memory_space<vmem>>, vector<8x1xf32>
      %150 = tpu.reciprocal %149 {approx = true} : vector<8x1xf32> -> vector<8x1xf32>
      %c1_93 = arith.constant 1 : index
      %c0_94 = arith.constant 0 : index
      %c0_95 = arith.constant 0 : index
      %151 = vector.load %arg11[%c1_93, %c0_94, %c0_95] : memref<4x8x32xf32, #tpu.memory_space<vmem>>, vector<1x8x32xf32>
      %152 = vector.shape_cast %151 : vector<1x8x32xf32> to vector<8x32xf32>
      %153 = vector.broadcast %150 : vector<8x1xf32> to vector<8x32xf32>
      %154 = arith.mulf %152, %153 : vector<8x32xf32>
      %155 = arith.truncf %154 : vector<8x32xf32> to vector<8x32xbf16>
      %c32 = arith.constant 32 : index
      %c0_96 = arith.constant 0 : index
      %156 = vector.load %arg6[%c32, %c0_96] : memref<128x128xbf16, #tpu.memory_space<vmem>>, vector<32x128xbf16>
      %cst_97 = arith.constant dense<0.000000e+00> : vector<8x128xf32>
      %157 = tpu.matmul %155, %156, %cst_97 {dimension_numbers = #tpu.dot_dimension_numbers<[1], [0], [0], [1], [0, 0, 1, 1], [], []>} : vector<8x32xbf16>, vector<32x128xbf16>, vector<8x128xf32> -> vector<8x128xf32>
      %158 = arith.addf %148, %157 : vector<8x128xf32>
      %c0_98 = arith.constant 0 : index
      %c2_99 = arith.constant 2 : index
      %159 = vector.load %arg10[%c0_98, %c2_99] : memref<8x4xf32, #tpu.memory_space<vmem>>, vector<8x1xf32>
      %160 = tpu.reciprocal %159 {approx = true} : vector<8x1xf32> -> vector<8x1xf32>
      %c2_100 = arith.constant 2 : index
      %c0_101 = arith.constant 0 : index
      %c0_102 = arith.constant 0 : index
      %161 = vector.load %arg11[%c2_100, %c0_101, %c0_102] : memref<4x8x32xf32, #tpu.memory_space<vmem>>, vector<1x8x32xf32>
      %162 = vector.shape_cast %161 : vector<1x8x32xf32> to vector<8x32xf32>
      %163 = vector.broadcast %160 : vector<8x1xf32> to vector<8x32xf32>
      %164 = arith.mulf %162, %163 : vector<8x32xf32>
      %165 = arith.truncf %164 : vector<8x32xf32> to vector<8x32xbf16>
      %c64 = arith.constant 64 : index
      %c0_103 = arith.constant 0 : index
      %166 = vector.load %arg6[%c64, %c0_103] : memref<128x128xbf16, #tpu.memory_space<vmem>>, vector<32x128xbf16>
      %cst_104 = arith.constant dense<0.000000e+00> : vector<8x128xf32>
      %167 = tpu.matmul %165, %166, %cst_104 {dimension_numbers = #tpu.dot_dimension_numbers<[1], [0], [0], [1], [0, 0, 1, 1], [], []>} : vector<8x32xbf16>, vector<32x128xbf16>, vector<8x128xf32> -> vector<8x128xf32>
      %168 = arith.addf %158, %167 : vector<8x128xf32>
      %c0_105 = arith.constant 0 : index
      %c3_106 = arith.constant 3 : index
      %169 = vector.load %arg10[%c0_105, %c3_106] : memref<8x4xf32, #tpu.memory_space<vmem>>, vector<8x1xf32>
      %170 = tpu.reciprocal %169 {approx = true} : vector<8x1xf32> -> vector<8x1xf32>
      %c3_107 = arith.constant 3 : index
      %c0_108 = arith.constant 0 : index
      %c0_109 = arith.constant 0 : index
      %171 = vector.load %arg11[%c3_107, %c0_108, %c0_109] : memref<4x8x32xf32, #tpu.memory_space<vmem>>, vector<1x8x32xf32>
      %172 = vector.shape_cast %171 : vector<1x8x32xf32> to vector<8x32xf32>
      %173 = vector.broadcast %170 : vector<8x1xf32> to vector<8x32xf32>
      %174 = arith.mulf %172, %173 : vector<8x32xf32>
      %175 = arith.truncf %174 : vector<8x32xf32> to vector<8x32xbf16>
      %c96 = arith.constant 96 : index
      %c0_110 = arith.constant 0 : index
      %176 = vector.load %arg6[%c96, %c0_110] : memref<128x128xbf16, #tpu.memory_space<vmem>>, vector<32x128xbf16>
      %cst_111 = arith.constant dense<0.000000e+00> : vector<8x128xf32>
      %177 = tpu.matmul %175, %176, %cst_111 {dimension_numbers = #tpu.dot_dimension_numbers<[1], [0], [0], [1], [0, 0, 1, 1], [], []>} : vector<8x32xbf16>, vector<32x128xbf16>, vector<8x128xf32> -> vector<8x128xf32>
      %178 = arith.addf %168, %177 : vector<8x128xf32>
      %c0_112 = arith.constant 0 : index
      %c0_113 = arith.constant 0 : index
      %179 = vector.load %arg7[%c0_112, %c0_113] : memref<1x128xf32, #tpu.memory_space<vmem>>, vector<1x128xf32>
      %180 = vector.broadcast %179 : vector<1x128xf32> to vector<8x128xf32>
      %181 = arith.addf %178, %180 : vector<8x128xf32>
      %c0_114 = arith.constant 0 : index
      %c0_115 = arith.constant 0 : index
      %c0_116 = arith.constant 0 : index
      %182 = vector.load %arg8[%c0_114, %c0_115, %c0_116] : memref<1x8x128xf32, #tpu.memory_space<vmem>>, vector<1x8x128xf32>
      %183 = vector.shape_cast %182 : vector<1x8x128xf32> to vector<8x128xf32>
      %184 = vector.shape_cast %181 : vector<8x128xf32> to vector<1x8x128xf32>
      tpu.vector_store %arg8[%c0_114, %c0_115, %c0_116], %184 {strides = array<i32>} : memref<1x8x128xf32, #tpu.memory_space<vmem>>, vector<1x8x128xf32>,
    } else {
    }
    return
  }
  func.func @transform_0(%arg0: i32, %arg1: i32, %arg2: i32) -> (i32, i32, i32) {
    %c0_i32 = arith.constant 0 : i32
    %c0_i32_0 = arith.constant 0 : i32
    return %arg0, %arg1, %c0_i32 : i32, i32, i32
  }
  func.func @transform_1(%arg0: i32, %arg1: i32, %arg2: i32) -> (i32, i32, i32) {
    %c1_i32 = arith.constant 1 : i32
    %c0_i32 = arith.constant 0 : i32
    return %arg0, %arg2, %c1_i32 : i32, i32, i32
  }
  func.func @transform_2(%arg0: i32, %arg1: i32, %arg2: i32) -> (i32, i32, i32) {
    %c2_i32 = arith.constant 2 : i32
    %c0_i32 = arith.constant 0 : i32
    return %arg0, %arg2, %c2_i32 : i32, i32, i32
  }
  func.func @transform_3(%arg0: i32, %arg1: i32, %arg2: i32) -> (i32, i32) {
    %c0_i32 = arith.constant 0 : i32
    %c0_i32_0 = arith.constant 0 : i32
    %c0_i32_1 = arith.constant 0 : i32
    return %c0_i32, %c0_i32_0 : i32, i32
  }
  func.func @transform_4(%arg0: i32, %arg1: i32, %arg2: i32) -> (i32, i32) {
    %c0_i32 = arith.constant 0 : i32
    %c0_i32_0 = arith.constant 0 : i32
    %c0_i32_1 = arith.constant 0 : i32
    return %c0_i32, %c0_i32_0 : i32, i32
  }
  func.func @transform_5(%arg0: i32, %arg1: i32, %arg2: i32) -> (i32, i32, i32) {
    %c0_i32 = arith.constant 0 : i32
    %c0_i32_0 = arith.constant 0 : i32
    return %arg0, %arg1, %c0_i32 : i32, i32, i32
  }
}

</mosaic_0001>

<llo_original>
// kernel: multihead_attention.2
$region0: #{multihead_attention.2}
  #allocation0 [shape = 'u32[]', space=smem, size = 0x4, offset = 0x4, fixed_abs, tag = 'smem constant byte address 0x4 - core index']
  #allocation1 [shape = 'u32[144,128]{1,0:T(1,128)}', space=vmem, size = 0x12000, scoped, tag = 'internal scratch']
  #allocation2 [shape = 'f32[16,128]{1,0:T(8,128)}', space=vmem, size = 0x2000, scoped, tag = 'scratch operand']
  %s0 = inlined_call_operand.vmem [shape: bf16[16,128], index: 0, kind: input, shape index: {}]
  %s1 = inlined_call_operand.vmem [shape: bf16[128,384], index: 1, kind: input, shape index: {}]
  %s2 = inlined_call_operand.vmem [shape: f32[1,384], index: 2, kind: input, shape index: {}]
  %s3 = inlined_call_operand.vmem [shape: bf16[16,384], index: 3, kind: output, shape index: {}]
  %s4 = sld [smem:[#allocation0]]
  $region131: #{multihead_attention.2} parent=0
    _
  %s6 = ssub.s32 1, %s4
  %s7 = scalar_select 0, %s6, %s4
  $region1: #{multihead_attention.2} parent=0
    #allocation3 [shape = 'u8[65536]{0}', space=vmem, size = 0x10000, scoped, tag = 'input window, operand 1']
    #allocation4 [shape = 'u8[8192]{0}', space=vmem, size = 0x2000, scoped, tag = 'output window, operand 0']
    loop: start=0, step=1, limit=5
    $region2: #{multihead_attention.2} parent=1 // loop_pre_header
      _
    $region3: #{multihead_attention.2} parent=1 // loop_header
      %s9 = sphi 0, %s13
      %p10 = scmp.ge.s32.totalorder %s9, 5
      %s16 = sphi 0, %s35
      %s17 = sphi 0, %s31
      %s18 = sphi 0, %s27
      %s19 = sphi 0, %s16
      %s20 = sphi 0, %s17
      %s21 = sphi 0, %s18
      %s22 = sphi 0, %s19
      %s23 = sphi 0, %s20
      %s24 = sphi 0, %s21
      %s40 = sphi 0, %s42
      %s43 = sphi 0, %s40
      %s44 = sphi 0, %s43
      %s60 = sphi 0, %s44
      %s68 = sphi 0, %s70
      %s71 = sphi 0, %s68
      %s72 = sphi 0, %s71
      %s88 = sphi 0, %s72
      %s94 = sphi 0, %s96
      %s97 = sphi 0, %s94
      %s98 = sphi 0, %s97
      %s114 = sphi 0, %s98
      %s122 = sphi 0, %s124
      %s125 = sphi 0, %s122
      %s126 = sphi 0, %s125
      %s142 = sphi 0, %s126
    $region4: #{multihead_attention.2} parent=1 // loop_header_branch
      %12 = sbr.rel (%p10) target = $region8
    $region5: #{multihead_attention.2} parent=1 // loop_body
      %s14 = ssub.s32 %s9, 1
      %s15 = ssub.s32 %s9, 2
      %s25 = sadd.s32 1, %s18
      %p26 = scmp.ge.s32.totalorder %s25, 1
      %s27 = scalar_select %p26, 0, %s25
      %s28 = sadd.s32 1, %s17
      %s29 = scalar_select %p26, %s28, %s17
      %p30 = scmp.ge.s32.totalorder %s29, 3
      %s31 = scalar_select %p30, 0, %s29
      %s32 = sadd.s32 1, %s16
      %s33 = scalar_select %p30, %s32, %s16
      %p34 = scmp.ge.s32.totalorder %s33, 1
      %s35 = scalar_select %p34, 0, %s33
      %s36 = ssub.s32 %s16, %s35
      %s37 = ssub.s32 %s18, %s27
      %s38 = sor.u32 %s36, %s37
      %p39 = scmp.eq.s32.totalorder %s38, 0
      %s41 = sadd.s32 %s40, 1
      %s42 = scalar_select %p39, %s40, %s41
      %p45 = pneg %p39
      %p46 = scmp.eq.s32.totalorder %s9, 2
      %p47 = por %p45, %p46
      %p48 = scmp.ne.s32.totalorder %s40, %s43
      %p49 = scmp.eq.s32.totalorder %s9, 0
      %p50 = por %p48, %p49
      %p51 = scmp.ne.s32.totalorder %s40, %s43
      %p52 = scmp.eq.s32.totalorder %s14, 2
      %p53 = por %p51, %p52
      %p54 = scmp.ne.s32.totalorder %s43, %s44
      %p55 = scmp.eq.s32.totalorder %s14, 0
      %p56 = por %p54, %p55
      %p57 = scmp.ne.s32.totalorder %s43, %s44
      %p58 = scmp.eq.s32.totalorder %s15, 2
      %p59 = por %p57, %p58
      %p61 = scmp.ne.s32.totalorder %s44, %s60
      %p62 = scmp.eq.s32.totalorder %s15, 0
      %p63 = por %p61, %p62
      %s64 = ssub.s32 %s18, %s27
      %s65 = ssub.s32 %s17, %s31
      %s66 = sor.u32 %s64, %s65
      %p67 = scmp.eq.s32.totalorder %s66, 0
      %s69 = sadd.s32 %s68, 1
      %s70 = scalar_select %p67, %s68, %s69
      %p73 = pneg %p67
      %p74 = scmp.eq.s32.totalorder %s9, 2
      %p75 = por %p73, %p74
      %p76 = scmp.ne.s32.totalorder %s68, %s71
      %p77 = scmp.eq.s32.totalorder %s9, 0
      %p78 = por %p76, %p77
      %p79 = scmp.ne.s32.totalorder %s68, %s71
      %p80 = scmp.eq.s32.totalorder %s14, 2
      %p81 = por %p79, %p80
      %p82 = scmp.ne.s32.totalorder %s71, %s72
      %p83 = scmp.eq.s32.totalorder %s14, 0
      %p84 = por %p82, %p83
      %p85 = scmp.ne.s32.totalorder %s71, %s72
      %p86 = scmp.eq.s32.totalorder %s15, 2
      %p87 = por %p85, %p86
      %p89 = scmp.ne.s32.totalorder %s72, %s88
      %p90 = scmp.eq.s32.totalorder %s15, 0
      %p91 = por %p89, %p90
      %s92 = ssub.s32 %s17, %s31
      %p93 = scmp.eq.s32.totalorder %s92, 0
      %s95 = sadd.s32 %s94, 1
      %s96 = scalar_select %p93, %s94, %s95
      %p99 = pneg %p93
      %p100 = scmp.eq.s32.totalorder %s9, 2
      %p101 = por %p99, %p100
      %p102 = scmp.ne.s32.totalorder %s94, %s97
      %p103 = scmp.eq.s32.totalorder %s9, 0
      %p104 = por %p102, %p103
      %p105 = scmp.ne.s32.totalorder %s94, %s97
      %p106 = scmp.eq.s32.totalorder %s14, 2
      %p107 = por %p105, %p106
      %p108 = scmp.ne.s32.totalorder %s97, %s98
      %p109 = scmp.eq.s32.totalorder %s14, 0
      %p110 = por %p108, %p109
      %p111 = scmp.ne.s32.totalorder %s97, %s98
      %p112 = scmp.eq.s32.totalorder %s15, 2
      %p113 = por %p111, %p112
      %p115 = scmp.ne.s32.totalorder %s98, %s114
      %p116 = scmp.eq.s32.totalorder %s15, 0
      %p117 = por %p115, %p116
      %s118 = ssub.s32 %s16, %s35
      %s119 = ssub.s32 %s17, %s31
      %s120 = sor.u32 %s118, %s119
      %p121 = scmp.eq.s32.totalorder %s120, 0
      %s123 = sadd.s32 %s122, 1
      %s124 = scalar_select %p121, %s122, %s123
      %p127 = pneg %p121
      %p128 = scmp.eq.s32.totalorder %s9, 2
      %p129 = por %p127, %p128
      %p130 = scmp.ne.s32.totalorder %s122, %s125
      %p131 = scmp.eq.s32.totalorder %s9, 0
      %p132 = por %p130, %p131
      %p133 = scmp.ne.s32.totalorder %s122, %s125
      %p134 = scmp.eq.s32.totalorder %s14, 2
      %p135 = por %p133, %p134
      %p136 = scmp.ne.s32.totalorder %s125, %s126
      %p137 = scmp.eq.s32.totalorder %s14, 0
      %p138 = por %p136, %p137
      %p139 = scmp.ne.s32.totalorder %s125, %s126
      %p140 = scmp.eq.s32.totalorder %s15, 2
      %p141 = por %p139, %p140
      %p143 = scmp.ne.s32.totalorder %s126, %s142
      %p144 = scmp.eq.s32.totalorder %s15, 0
      %p145 = por %p143, %p144
      %p146 = scmp.le.s32.totalorder 1, %s9
      %p147 = scmp.lt.s32.totalorder %s9, 4
      %p148 = pnand %p146, %p147
      %p149 = pneg %p148
      // Predicated region
      $region9: #{multihead_attention.2} parent=5 // pred_check
        _
      $region10: #{multihead_attention.2} parent=5 // pred_check_branch
        %151 = sbr.rel (%p148) target = $region12
      $region11: #{multihead_attention.2} parent=5 // pred_region
        %s152 = ssub.s32 %s9, 1
        // Predicated region
        $region13: #{multihead_attention.2} parent=11 // pred_check
          %p153 = pneg %p56
        $region14: #{multihead_attention.2} parent=11 // pred_check_branch
          %155 = sbr.rel (%p153) target = $region16
        $region15: #{multihead_attention.2} parent=11 // pred_region
          %s156 = smul.u32 2, %s19
          %p157 = scmp.lt.s32.totalorder %s156, 1
          %s158 = scalar_select %p157, %s156, 1
          %p159 = scmp.lt.s32.totalorder %s21, 0
          %s160 = scalar_select %p159, %s21, 0
          %s161 = sadd.s32 %s160, %s158
          %s162 = smul.addr %s161, 4
          %s163 = scalar_lea.vmem %s0, %s162
          %s164 = smul.u32 2, %s19
        $region16: #{multihead_attention.2} parent=11 // pred_fallthru
          _
      $region12: #{multihead_attention.2} parent=5 // pred_fallthru
        _
      %p165 = scmp.lt.s32.totalorder %s9, 3
      // Predicated region
      $region17: #{multihead_attention.2} parent=5 // pred_check
        %p166 = pneg %p165
      $region18: #{multihead_attention.2} parent=5 // pred_check_branch
        %168 = sbr.rel (%p166) target = $region20
      $region19: #{multihead_attention.2} parent=5 // pred_region
        // Predicated region
        $region21: #{multihead_attention.2} parent=19 // pred_check
          %p169 = pneg %p78
        $region22: #{multihead_attention.2} parent=19 // pred_check_branch
          %171 = sbr.rel (%p169) target = $region24
        $region23: #{multihead_attention.2} parent=19 // pred_region
          %s172 = sand.u32 %s68, 1
          %s173 = sand.u32 %s68, 1
          %s174 = smul.addr %s173, 64
          %s175 = scalar_lea.vmem [#allocation3], %s174
          %s176 = smul.u32 16, %s18
          %s177 = smul.addr %s176, 3
          %s178 = sadd.s32 %s17, %s177
          %s179 = smul.addr %s178, 4
          %s180 = scalar_lea.vmem %s1, %s179
          // Predicated region
          $region25: #{multihead_attention.2} parent=23 // pred_check
            _
          $region26: #{multihead_attention.2} parent=23 // pred_check_branch
            %182 = sbr.rel (0) target = $region28
          $region27: #{multihead_attention.2} parent=23 // pred_region
            // Predicated region
            $region29: #{multihead_attention.2} parent=27 // pred_check
              _
            $region30: #{multihead_attention.2} parent=27 // pred_check_branch
              %184 = sbr.rel target = $region32
            $region31: #{multihead_attention.2} parent=27 // pred_region
              // Predicated region
              $region44: #{multihead_attention.2} parent=31 // pred_check
                _
              $region45: #{multihead_attention.2} parent=31 // pred_check_branch
                %230 = sbr.rel (0) target = $region47
              $region46: #{multihead_attention.2} parent=31 // pred_region
                loop: start=0, step=1, limit=1
                $region48: #{multihead_attention.2} parent=46 // loop_pre_header
                  _
                $region49: #{multihead_attention.2} parent=46 // loop_header
                  %s232 = sphi 0, %s236
                  %p233 = scmp.ge.s32.totalorder %s232, 1
                  %s237 = sphi %s180, %s180
                  %s238 = sphi %s175, %s175
                $region50: #{multihead_attention.2} parent=46 // loop_header_branch
                  %235 = sbr.rel (%p233) target = $region54
                $region51: #{multihead_attention.2} parent=46 // loop_body
                  _
                $region52: #{multihead_attention.2} parent=46 // loop_footer
                  %s236 = sadd.s32 1, %s232
                $region53: #{multihead_attention.2} parent=46 // loop_footer_branch
                  %231 = sbr.rel target = $region49
                $region54: #{multihead_attention.2} parent=46 // loop_exit
                  _
                %s240 = ssub.s32 16, 1
                loop: start=0, step=1, limit=1
                $region55: #{multihead_attention.2} parent=46 // loop_pre_header
                  _
                $region56: #{multihead_attention.2} parent=46 // loop_header
                  %s242 = sphi 0, %s246
                  %p243 = scmp.ge.s32.totalorder %s242, 1
                  %s247 = sphi %s180, %s180
                  %s248 = sphi %s175, %s175
                $region57: #{multihead_attention.2} parent=46 // loop_header_branch
                  %245 = sbr.rel (%p243) target = $region61
                $region58: #{multihead_attention.2} parent=46 // loop_body
                  %v249 = vld [vmem:[%s247] sm:%s240]
                  %250 = vst [vmem:[%s248] sm:%s240] %v249
                  %v251 = vld [vmem:[%s247 + $0xc] sm:%s240]
                  %252 = vst [vmem:[%s248 + $0x4] sm:%s240] %v251
                  %v253 = vld [vmem:[%s247 + $0x18] sm:%s240]
                  %254 = vst [vmem:[%s248 + $0x8] sm:%s240] %v253
                  %v255 = vld [vmem:[%s247 + $0x24] sm:%s240]
                  %256 = vst [vmem:[%s248 + $0xc] sm:%s240] %v255
                  %v257 = vld [vmem:[%s247 + $0x30] sm:%s240]
                  %258 = vst [vmem:[%s248 + $0x10] sm:%s240] %v257
                  %v259 = vld [vmem:[%s247 + $0x3c] sm:%s240]
                  %260 = vst [vmem:[%s248 + $0x14] sm:%s240] %v259
                  %v261 = vld [vmem:[%s247 + $0x48] sm:%s240]
                  %262 = vst [vmem:[%s248 + $0x18] sm:%s240] %v261
                  %v263 = vld [vmem:[%s247 + $0x54] sm:%s240]
                  %264 = vst [vmem:[%s248 + $0x1c] sm:%s240] %v263
                  %v265 = vld [vmem:[%s247 + $0x60] sm:%s240]
                  %266 = vst [vmem:[%s248 + $0x20] sm:%s240] %v265
                  %v267 = vld [vmem:[%s247 + $0x6c] sm:%s240]
                  %268 = vst [vmem:[%s248 + $0x24] sm:%s240] %v267
                  %v269 = vld [vmem:[%s247 + $0x78] sm:%s240]
                  %270 = vst [vmem:[%s248 + $0x28] sm:%s240] %v269
                  %v271 = vld [vmem:[%s247 + $0x84] sm:%s240]
                  %272 = vst [vmem:[%s248 + $0x2c] sm:%s240] %v271
                  %v273 = vld [vmem:[%s247 + $0x90] sm:%s240]
                  %274 = vst [vmem:[%s248 + $0x30] sm:%s240] %v273
                  %v275 = vld [vmem:[%s247 + $0x9c] sm:%s240]
                  %276 = vst [vmem:[%s248 + $0x34] sm:%s240] %v275
                  %v277 = vld [vmem:[%s247 + $0xa8] sm:%s240]
                  %278 = vst [vmem:[%s248 + $0x38] sm:%s240] %v277
                  %v279 = vld [vmem:[%s247 + $0xb4] sm:%s240]
                  %280 = vst [vmem:[%s248 + $0x3c] sm:%s240] %v279
                $region59: #{multihead_attention.2} parent=46 // loop_footer
                  %s246 = sadd.s32 1, %s242
                $region60: #{multihead_attention.2} parent=46 // loop_footer_branch
                  %241 = sbr.rel target = $region56
                $region61: #{multihead_attention.2} parent=46 // loop_exit
                  _
              $region47: #{multihead_attention.2} parent=31 // pred_fallthru
                _
            $region32: #{multihead_attention.2} parent=27 // pred_fallthru
              _
            // Predicated region
            $region33: #{multihead_attention.2} parent=27 // pred_check
              _
            $region34: #{multihead_attention.2} parent=27 // pred_check_branch
              %186 = sbr.rel (0) target = $region36
            $region35: #{multihead_attention.2} parent=27 // pred_region
              %s188 = ssub.s32 16, 1
              loop: start=0, step=1, limit=1
              $region37: #{multihead_attention.2} parent=35 // loop_pre_header
                _
              $region38: #{multihead_attention.2} parent=35 // loop_header
                %s190 = sphi 0, %s194
                %p191 = scmp.ge.s32.totalorder %s190, 1
                %s195 = sphi %s180, %s180
                %s196 = sphi %s175, %s175
              $region39: #{multihead_attention.2} parent=35 // loop_header_branch
                %193 = sbr.rel (%p191) target = $region43
              $region40: #{multihead_attention.2} parent=35 // loop_body
                %v197 = vld [vmem:[%s195] sm:%s188]
                %198 = vst [vmem:[%s196] sm:%s188] %v197
                %v199 = vld [vmem:[%s195 + $0xc] sm:%s188]
                %200 = vst [vmem:[%s196 + $0x4] sm:%s188] %v199
                %v201 = vld [vmem:[%s195 + $0x18] sm:%s188]
                %202 = vst [vmem:[%s196 + $0x8] sm:%s188] %v201
                %v203 = vld [vmem:[%s195 + $0x24] sm:%s188]
                %204 = vst [vmem:[%s196 + $0xc] sm:%s188] %v203
                %v205 = vld [vmem:[%s195 + $0x30] sm:%s188]
                %206 = vst [vmem:[%s196 + $0x10] sm:%s188] %v205
                %v207 = vld [vmem:[%s195 + $0x3c] sm:%s188]
                %208 = vst [vmem:[%s196 + $0x14] sm:%s188] %v207
                %v209 = vld [vmem:[%s195 + $0x48] sm:%s188]
                %210 = vst [vmem:[%s196 + $0x18] sm:%s188] %v209
                %v211 = vld [vmem:[%s195 + $0x54] sm:%s188]
                %212 = vst [vmem:[%s196 + $0x1c] sm:%s188] %v211
                %v213 = vld [vmem:[%s195 + $0x60] sm:%s188]
                %214 = vst [vmem:[%s196 + $0x20] sm:%s188] %v213
                %v215 = vld [vmem:[%s195 + $0x6c] sm:%s188]
                %216 = vst [vmem:[%s196 + $0x24] sm:%s188] %v215
                %v217 = vld [vmem:[%s195 + $0x78] sm:%s188]
                %218 = vst [vmem:[%s196 + $0x28] sm:%s188] %v217
                %v219 = vld [vmem:[%s195 + $0x84] sm:%s188]
                %220 = vst [vmem:[%s196 + $0x2c] sm:%s188] %v219
                %v221 = vld [vmem:[%s195 + $0x90] sm:%s188]
                %222 = vst [vmem:[%s196 + $0x30] sm:%s188] %v221
                %v223 = vld [vmem:[%s195 + $0x9c] sm:%s188]
                %224 = vst [vmem:[%s196 + $0x34] sm:%s188] %v223
                %v225 = vld [vmem:[%s195 + $0xa8] sm:%s188]
                %226 = vst [vmem:[%s196 + $0x38] sm:%s188] %v225
                %v227 = vld [vmem:[%s195 + $0xb4] sm:%s188]
                %228 = vst [vmem:[%s196 + $0x3c] sm:%s188] %v227
              $region41: #{multihead_attention.2} parent=35 // loop_footer
                %s194 = sadd.s32 1, %s190
              $region42: #{multihead_attention.2} parent=35 // loop_footer_branch
                %189 = sbr.rel target = $region38
              $region43: #{multihead_attention.2} parent=35 // loop_exit
                _
            $region36: #{multihead_attention.2} parent=27 // pred_fallthru
              _
          $region28: #{multihead_attention.2} parent=23 // pred_fallthru
            _
          %281 = vnop
        $region24: #{multihead_attention.2} parent=19 // pred_fallthru
          _
        // Predicated region
        $region62: #{multihead_attention.2} parent=19 // pred_check
          %p282 = pneg %p104
        $region63: #{multihead_attention.2} parent=19 // pred_check_branch
          %284 = sbr.rel (%p282) target = $region65
        $region64: #{multihead_attention.2} parent=19 // pred_region
          %p285 = scmp.lt.s32.totalorder %s17, 2
          %s286 = scalar_select %p285, %s17, 2
          %s287 = scalar_lea.vmem %s2, %s286
        $region65: #{multihead_attention.2} parent=19 // pred_fallthru
          _
      $region20: #{multihead_attention.2} parent=5 // pred_fallthru
        _
      %p288 = scmp.le.s32.totalorder 1, %s9
      %p289 = scmp.lt.s32.totalorder %s9, 4
      %p290 = pnand %p288, %p289
      %p291 = pneg %p290
      // Predicated region
      $region66: #{multihead_attention.2} parent=5 // pred_check
        _
      $region67: #{multihead_attention.2} parent=5 // pred_check_branch
        %293 = sbr.rel (%p290) target = $region69
      $region68: #{multihead_attention.2} parent=5 // pred_region
        %s294 = ssub.s32 %s9, 1
        %s295 = sand.u32 %s71, 1
        %s296 = sand.u32 %s71, 1
        %s297 = smul.addr %s296, 64
        %s298 = scalar_lea.vmem [#allocation3], %s297
        // Predicated region
        $region70: #{multihead_attention.2} parent=68 // pred_check
          %p299 = pneg %p84
        $region71: #{multihead_attention.2} parent=68 // pred_check_branch
          %301 = sbr.rel (%p299) target = $region73
        $region72: #{multihead_attention.2} parent=68 // pred_region
          _
        $region73: #{multihead_attention.2} parent=68 // pred_fallthru
          _
        %s302 = smul.u32 2, %s19
        %p303 = scmp.lt.s32.totalorder %s302, 1
        %s304 = scalar_select %p303, %s302, 1
        %p305 = scmp.lt.s32.totalorder %s21, 0
        %s306 = scalar_select %p305, %s21, 0
        %s307 = sadd.s32 %s306, %s304
        %s308 = smul.addr %s307, 4
        %s309 = scalar_lea.vmem %s0, %s308
        %p310 = pneg %p56
        %p311 = pneg %p53
        %s312 = sand.u32 %s71, 1
        %s313 = sand.u32 %s71, 1
        %s314 = smul.addr %s313, 64
        %s315 = scalar_lea.vmem [#allocation3], %s314
        %p316 = pneg %p84
        %p317 = pneg %p81
        %p318 = scmp.lt.s32.totalorder %s20, 2
        %s319 = scalar_select %p318, %s20, 2
        %s320 = scalar_lea.vmem %s2, %s319
        %p321 = pneg %p110
        %p322 = pneg %p107
        %p323 = pneg %p138
        %p324 = pneg %p135
        %s325 = sand.u32 %s125, 1
        %s326 = sand.u32 %s125, 1
        %s327 = smul.addr %s326, 8
        %s328 = scalar_lea.vmem [#allocation4], %s327
        %s329 = smul.u32 2, %s19
        %p330 = scmp.lt.s32.totalorder %s329, 1
        %s331 = scalar_select %p330, %s329, 1
        %p332 = scmp.lt.s32.totalorder %s21, 0
        %s333 = scalar_select %p332, %s21, 0
        %s334 = sadd.s32 %s333, %s331
        %s335 = smul.addr %s334, 4
        %s336 = scalar_lea.vmem %s0, %s335
        %s337 = smul.u32 2, %s19
        %s338 = smul.u32 16, %s21
        %p339 = scmp.lt.s32.totalorder %s20, 2
        %s340 = scalar_select %p339, %s20, 2
        %s341 = scalar_lea.vmem %s2, %s340
        %s342 = smul.u32 2, %s19
        %p344 = scmp.eq.s32.totalorder %s21, 0
        // Predicated region
        $region74: #{multihead_attention.2} parent=68 // pred_check
          %p345 = pneg %p344
        $region75: #{multihead_attention.2} parent=68 // pred_check_branch
          %347 = sbr.rel (%p345) target = $region77
        $region76: #{multihead_attention.2} parent=68 // pred_region
          %348 = vst [vmem:[#allocation2] sm:$0xff] 0.0
          %349 = vst [vmem:[#allocation2 + $0x8] sm:$0xff] 0.0
        $region77: #{multihead_attention.2} parent=68 // pred_fallthru
          _
        %v350 = vld [vmem:[#allocation2] sm:$0xff]
        %v351 = vld [vmem:[#allocation2 + $0x8] sm:$0xff]
        %v352 = vld [vmem:[%s336] sm:$0xf]
        %v353 = vld [vmem:[%s336 + $0x4] sm:$0xf]
        %v354 = vld [vmem:[%s298] sm:$0xf]
        %v355 = vld [vmem:[%s298 + $0x4] sm:$0xf]
        %v356 = vld [vmem:[%s298 + $0x8] sm:$0xf]
        %v357 = vld [vmem:[%s298 + $0xc] sm:$0xf]
        %v358 = vld [vmem:[%s298 + $0x10] sm:$0xf]
        %v359 = vld [vmem:[%s298 + $0x14] sm:$0xf]
        %v360 = vld [vmem:[%s298 + $0x18] sm:$0xf]
        %v361 = vld [vmem:[%s298 + $0x1c] sm:$0xf]
        %v362 = vld [vmem:[%s298 + $0x20] sm:$0xf]
        %v363 = vld [vmem:[%s298 + $0x24] sm:$0xf]
        %v364 = vld [vmem:[%s298 + $0x28] sm:$0xf]
        %v365 = vld [vmem:[%s298 + $0x2c] sm:$0xf]
        %v366 = vld [vmem:[%s298 + $0x30] sm:$0xf]
        %v367 = vld [vmem:[%s298 + $0x34] sm:$0xf]
        %v368 = vld [vmem:[%s298 + $0x38] sm:$0xf]
        %v369 = vld [vmem:[%s298 + $0x3c] sm:$0xf]
        %v372 = vunpack.c.l.b16 %v352
        %v373 = vunpack.c.l.b16 %v353
        %v374 = vpack.c.b16 %v373, %v372
        %v392 = vunpack.c.l.b16 %v354
        %v393 = vunpack.c.l.b16 %v355
        %v394 = vunpack.c.l.b16 %v356
        %v395 = vunpack.c.l.b16 %v357
        %v396 = vunpack.c.l.b16 %v358
        %v397 = vunpack.c.l.b16 %v359
        %v398 = vunpack.c.l.b16 %v360
        %v399 = vunpack.c.l.b16 %v361
        %v400 = vunpack.c.l.b16 %v362
        %v401 = vunpack.c.l.b16 %v363
        %v402 = vunpack.c.l.b16 %v364
        %v403 = vunpack.c.l.b16 %v365
        %v404 = vunpack.c.l.b16 %v366
        %v405 = vunpack.c.l.b16 %v367
        %v406 = vunpack.c.l.b16 %v368
        %v407 = vunpack.c.l.b16 %v369
        %v408 = vpack.c.b16 %v393, %v392
        %v409 = vpack.c.b16 %v395, %v394
        %v410 = vpack.c.b16 %v397, %v396
        %v411 = vpack.c.b16 %v399, %v398
        %v412 = vpack.c.b16 %v401, %v400
        %v413 = vpack.c.b16 %v403, %v402
        %v414 = vpack.c.b16 %v405, %v404
        %v415 = vpack.c.b16 %v407, %v406
        %424 = vmatprep.subr.bf16.mxu0 0
        %425 = vmatpush1.bf16.msra.mxu0 %v415
        %426 = vmatprep.subr.bf16.mxu0 0
        %427 = vmatpush1.bf16.msra.mxu0 %v414
        %428 = vmatprep.subr.bf16.mxu0 0
        %429 = vmatpush1.bf16.msra.mxu0 %v413
        %430 = vmatprep.subr.bf16.mxu0 0
        %431 = vmatpush1.bf16.msra.mxu0 %v412
        %432 = vmatprep.subr.bf16.mxu0 0
        %433 = vmatpush1.bf16.msra.mxu0 %v411
        %434 = vmatprep.subr.bf16.mxu0 0
        %435 = vmatpush1.bf16.msra.mxu0 %v410
        %436 = vmatprep.subr.bf16.mxu0 0
        %437 = vmatpush1.bf16.msra.mxu0 %v409
        %438 = vmatprep.subr.bf16.mxu0 0
        %439 = vmatpush1.bf16.msra.mxu0 %v408
        %440 = vmatprep.subr.bf16.mxu0 0
        %441 = vmatpush2.bf16.msra.mxu0 0
        %442 = vmatprep.subr.bf16.mxu0 0
        %443 = vmatpush2.bf16.msra.mxu0 0
        %444 = vmatprep.subr.bf16.mxu0 0
        %445 = vmatpush2.bf16.msra.mxu0 0
        %446 = vmatprep.subr.bf16.mxu0 0
        %447 = vmatpush2.bf16.msra.mxu0 0
        %448 = vmatprep.subr.bf16.mxu0 0
        %449 = vmatpush2.bf16.msra.mxu0 0
        %450 = vmatprep.subr.bf16.mxu0 0
        %451 = vmatpush2.bf16.msra.mxu0 0
        %452 = vmatprep.subr.bf16.mxu0 0
        %453 = vmatpush2.bf16.msra.mxu0 0
        %454 = vmatprep.subr.bf16.mxu0 0
        %455 = vmatpush2.bf16.msra.mxu0 0
        %456 = vmatprep.mubr.bf16.mxu0 0
        %457 = vmatmul.mubr.bf16.gmra.mxu0 %v374
        %v458 = vpop.f32.mrf.mxu0
        %v459 = vadd.f32 0.0, %v458
        %v460 = vpop.f32.mrf.mxu0
        %v461 = vpop.f32.mrf.mxu0
        %v462 = vadd.f32 0.0, %v461
        %v463 = vpop.f32.mrf.mxu0
        %464 = vdwg.mxu0
        %v465 = vadd.f32 %v350, %v459
        %v466 = vadd.f32 %v351, %v462
        %467 = vst [vmem:[#allocation2] sm:$0xff] %v465
        %468 = vst [vmem:[#allocation2 + $0x8] sm:$0xff] %v466
        // Predicated region
        $region78: #{multihead_attention.2} parent=68 // pred_check
          %p469 = pneg %p344
        $region79: #{multihead_attention.2} parent=68 // pred_check_branch
          %471 = sbr.rel (%p469) target = $region81
        $region80: #{multihead_attention.2} parent=68 // pred_region
          %v472 = vld [vmem:[#allocation2] sm:$0xff]
          %v473 = vld [vmem:[#allocation2 + $0x8] sm:$0xff]
          %v474 = vld [vmem:[%s341] sm:$0x1]
          %v476 = vlaneseq
          %v477 = vshrl.u32 %v476, 7
          %v478 = vsub.s32 0, %v477
          %v479 = vrot.slane %v474, %v478
          %v481 = vadd.f32 %v472, %v479
          %v482 = vadd.f32 %v473, %v479
          %v483 = vpack.c.bf16 %v482, %v481
          %v485 = vunpack.c.l.b16 %v483
          %v486 = vunpack.c.h.b16 %v483
          %v487 = vpack.c.b16 %v485, %v485
          %v488 = vpack.c.b16 %v486, %v486
          %491 = vst [vmem:[%s328] sm:$0xf] %v487
          %492 = vst [vmem:[%s328 + $0x4] sm:$0xf] %v488
        $region81: #{multihead_attention.2} parent=68 // pred_fallthru
          _
        %s493 = sand.u32 %s125, 1
        %s494 = sand.u32 %s125, 1
        %s495 = smul.addr %s494, 8
        %s496 = scalar_lea.vmem [#allocation4], %s495
        // Predicated region
        $region82: #{multihead_attention.2} parent=68 // pred_check
          %p497 = pneg %p135
        $region83: #{multihead_attention.2} parent=68 // pred_check_branch
          %499 = sbr.rel (%p497) target = $region85
        $region84: #{multihead_attention.2} parent=68 // pred_region
          %s500 = smul.u32 2, %s19
          %s501 = smul.addr %s500, 3
          %s502 = sadd.s32 %s20, %s501
          %s503 = smul.addr %s502, 4
          %s504 = scalar_lea.vmem %s3, %s503
          // Predicated region
          $region86: #{multihead_attention.2} parent=84 // pred_check
            _
          $region87: #{multihead_attention.2} parent=84 // pred_check_branch
            %506 = sbr.rel (0) target = $region89
          $region88: #{multihead_attention.2} parent=84 // pred_region
            // Predicated region
            $region90: #{multihead_attention.2} parent=88 // pred_check
              _
            $region91: #{multihead_attention.2} parent=88 // pred_check_branch
              %508 = sbr.rel target = $region93
            $region92: #{multihead_attention.2} parent=88 // pred_region
              // Predicated region
              $region105: #{multihead_attention.2} parent=92 // pred_check
                _
              $region106: #{multihead_attention.2} parent=92 // pred_check_branch
                %526 = sbr.rel (0) target = $region108
              $region107: #{multihead_attention.2} parent=92 // pred_region
                loop: start=0, step=1, limit=1
                $region109: #{multihead_attention.2} parent=107 // loop_pre_header
                  _
                $region110: #{multihead_attention.2} parent=107 // loop_header
                  %s528 = sphi 0, %s532
                  %p529 = scmp.ge.s32.totalorder %s528, 1
                  %s533 = sphi %s496, %s496
                  %s534 = sphi %s504, %s504
                $region111: #{multihead_attention.2} parent=107 // loop_header_branch
                  %531 = sbr.rel (%p529) target = $region115
                $region112: #{multihead_attention.2} parent=107 // loop_body
                  _
                $region113: #{multihead_attention.2} parent=107 // loop_footer
                  %s532 = sadd.s32 1, %s528
                $region114: #{multihead_attention.2} parent=107 // loop_footer_branch
                  %527 = sbr.rel target = $region110
                $region115: #{multihead_attention.2} parent=107 // loop_exit
                  _
                %s536 = ssub.s32 16, 1
                loop: start=0, step=1, limit=1
                $region116: #{multihead_attention.2} parent=107 // loop_pre_header
                  _
                $region117: #{multihead_attention.2} parent=107 // loop_header
                  %s538 = sphi 0, %s542
                  %p539 = scmp.ge.s32.totalorder %s538, 1
                  %s543 = sphi %s496, %s496
                  %s544 = sphi %s504, %s504
                $region118: #{multihead_attention.2} parent=107 // loop_header_branch
                  %541 = sbr.rel (%p539) target = $region122
                $region119: #{multihead_attention.2} parent=107 // loop_body
                  %v545 = vld [vmem:[%s543] sm:%s536]
                  %546 = vst [vmem:[%s544] sm:%s536] %v545
                  %v547 = vld [vmem:[%s543 + $0x4] sm:%s536]
                  %548 = vst [vmem:[%s544 + $0xc] sm:%s536] %v547
                $region120: #{multihead_attention.2} parent=107 // loop_footer
                  %s542 = sadd.s32 1, %s538
                $region121: #{multihead_attention.2} parent=107 // loop_footer_branch
                  %537 = sbr.rel target = $region117
                $region122: #{multihead_attention.2} parent=107 // loop_exit
                  _
              $region108: #{multihead_attention.2} parent=92 // pred_fallthru
                _
            $region93: #{multihead_attention.2} parent=88 // pred_fallthru
              _
            // Predicated region
            $region94: #{multihead_attention.2} parent=88 // pred_check
              _
            $region95: #{multihead_attention.2} parent=88 // pred_check_branch
              %510 = sbr.rel (0) target = $region97
            $region96: #{multihead_attention.2} parent=88 // pred_region
              %s512 = ssub.s32 16, 1
              loop: start=0, step=1, limit=1
              $region98: #{multihead_attention.2} parent=96 // loop_pre_header
                _
              $region99: #{multihead_attention.2} parent=96 // loop_header
                %s514 = sphi 0, %s518
                %p515 = scmp.ge.s32.totalorder %s514, 1
                %s519 = sphi %s496, %s496
                %s520 = sphi %s504, %s504
              $region100: #{multihead_attention.2} parent=96 // loop_header_branch
                %517 = sbr.rel (%p515) target = $region104
              $region101: #{multihead_attention.2} parent=96 // loop_body
                %v521 = vld [vmem:[%s519] sm:%s512]
                %522 = vst [vmem:[%s520] sm:%s512] %v521
                %v523 = vld [vmem:[%s519 + $0x4] sm:%s512]
                %524 = vst [vmem:[%s520 + $0xc] sm:%s512] %v523
              $region102: #{multihead_attention.2} parent=96 // loop_footer
                %s518 = sadd.s32 1, %s514
              $region103: #{multihead_attention.2} parent=96 // loop_footer_branch
                %513 = sbr.rel target = $region99
              $region104: #{multihead_attention.2} parent=96 // loop_exit
                _
            $region97: #{multihead_attention.2} parent=88 // pred_fallthru
              _
          $region89: #{multihead_attention.2} parent=84 // pred_fallthru
            _
          %549 = vnop
        $region85: #{multihead_attention.2} parent=68 // pred_fallthru
          _
      $region69: #{multihead_attention.2} parent=5 // pred_fallthru
        _
      %p550 = scmp.le.s32.totalorder 2, %s9
      // Predicated region
      $region123: #{multihead_attention.2} parent=5 // pred_check
        %p551 = pneg %p550
      $region124: #{multihead_attention.2} parent=5 // pred_check_branch
        %553 = sbr.rel (%p551) target = $region126
      $region125: #{multihead_attention.2} parent=5 // pred_region
        %s554 = ssub.s32 %s9, 2
        // Predicated region
        $region127: #{multihead_attention.2} parent=125 // pred_check
          %p555 = pneg %p141
        $region128: #{multihead_attention.2} parent=125 // pred_check_branch
          %557 = sbr.rel (%p555) target = $region130
        $region129: #{multihead_attention.2} parent=125 // pred_region
          %s558 = sand.u32 %s126, 1
          %s559 = sand.u32 %s126, 1
          %s560 = smul.addr %s559, 8
          %s561 = scalar_lea.vmem [#allocation4], %s560
        $region130: #{multihead_attention.2} parent=125 // pred_fallthru
          _
      $region126: #{multihead_attention.2} parent=5 // pred_fallthru
        _
    $region6: #{multihead_attention.2} parent=1 // loop_footer
      %s13 = sadd.s32 1, %s9
    $region7: #{multihead_attention.2} parent=1 // loop_footer_branch
      %8 = sbr.rel target = $region3
    $region8: #{multihead_attention.2} parent=1 // loop_exit
      _

// kernel: multihead_attention.3
$region0: #{multihead_attention.3}
  #allocation0 [shape = 'u32[]', space=smem, size = 0x4, offset = 0x4, fixed_abs, tag = 'smem constant byte address 0x4 - core index']
  #allocation1 [shape = 'u32[144,128]{1,0:T(1,128)}', space=vmem, size = 0x12000, scoped, tag = 'internal scratch']
  #allocation2 [shape = 'f32[8,4]{1,0:T(8,128)}', space=vmem, size = 0x1000, scoped, tag = 'scratch operand']
  #allocation3 [shape = 'f32[8,4]{1,0:T(8,128)}', space=vmem, size = 0x1000, scoped, tag = 'scratch operand']
  #allocation4 [shape = 'f32[4,8,32]{2,1,0:T(8,128)}', space=vmem, size = 0x4000, scoped, tag = 'scratch operand']
  %s0 = inlined_call_operand.vmem [shape: bf16[2,8,384], index: 0, kind: input, shape index: {}, may-alias: {0,1,2}]
  %s1 = inlined_call_operand.vmem [shape: bf16[2,8,384], index: 1, kind: input, shape index: {}, may-alias: {0,1,2}]
  %s2 = inlined_call_operand.vmem [shape: bf16[2,8,384], index: 2, kind: input, shape index: {}, may-alias: {0,1,2}]
  %s3 = inlined_call_operand.vmem [shape: bf16[128,128], index: 3, kind: input, shape index: {}]
  %s4 = inlined_call_operand.vmem [shape: f32[1,128], index: 4, kind: input, shape index: {}]
  %s5 = inlined_call_operand.hbm [shape: f32[2,8,128], index: 5, kind: output, shape index: {}]
  %s6 = sld [smem:[#allocation0]]
  $region61: #{multihead_attention.3} parent=0
    _
  %s8 = ssub.s32 1, %s6
  %s9 = scalar_select 0, %s8, %s6
  $region1: #{multihead_attention.3} parent=0
    #allocation5 [shape = 'u8[8192]{0}', space=vmem, size = 0x2000, scoped, tag = 'output window, operand 0']
    #allocation6 [shape = 's32[2]{0}', space=sflag, size = 0x8, scoped, tag = 'scoped memory for multihead_attention.3']
    %10 = vsyncpa [#allocation6], 0
    %s11 = scalar_lea.sflag [#allocation6], 1
    %12 = vsyncpa %s11, 0
    loop: start=0, step=1, limit=4
    $region2: #{multihead_attention.3} parent=1 // loop_pre_header
      _
    $region3: #{multihead_attention.3} parent=1 // loop_header
      %s14 = sphi 0, %s18
      %p15 = scmp.ge.s32.totalorder %s14, 4
      %s21 = sphi 0, %s40
      %s22 = sphi 0, %s36
      %s23 = sphi 0, %s32
      %s24 = sphi 0, %s21
      %s25 = sphi 0, %s22
      %s26 = sphi 0, %s23
      %s27 = sphi 0, %s24
      %s28 = sphi 0, %s25
      %s29 = sphi 0, %s26
      %s45 = sphi 0, %s47
      %s48 = sphi 0, %s45
      %s49 = sphi 0, %s48
      %s65 = sphi 0, %s49
      %s73 = sphi 0, %s75
      %s76 = sphi 0, %s73
      %s77 = sphi 0, %s76
      %s93 = sphi 0, %s77
      %s101 = sphi 0, %s103
      %s104 = sphi 0, %s101
      %s105 = sphi 0, %s104
      %s121 = sphi 0, %s105
      %s125 = sphi 0, %s125
      %s127 = sphi 0, %s125
      %s128 = sphi 0, %s127
      %s142 = sphi 0, %s128
      %s146 = sphi 0, %s146
      %s148 = sphi 0, %s146
      %s149 = sphi 0, %s148
      %s163 = sphi 0, %s149
      %s171 = sphi 0, %s173
      %s174 = sphi 0, %s171
      %s175 = sphi 0, %s174
      %s191 = sphi 0, %s175
    $region4: #{multihead_attention.3} parent=1 // loop_header_branch
      %17 = sbr.rel (%p15) target = $region8
    $region5: #{multihead_attention.3} parent=1 // loop_body
      %s19 = ssub.s32 %s14, 1
      %s20 = ssub.s32 %s14, 2
      %s30 = sadd.s32 1, %s23
      %p31 = scmp.ge.s32.totalorder %s30, 1
      %s32 = scalar_select %p31, 0, %s30
      %s33 = sadd.s32 1, %s22
      %s34 = scalar_select %p31, %s33, %s22
      %p35 = scmp.ge.s32.totalorder %s34, 1
      %s36 = scalar_select %p35, 0, %s34
      %s37 = sadd.s32 1, %s21
      %s38 = scalar_select %p35, %s37, %s21
      %p39 = scmp.ge.s32.totalorder %s38, 2
      %s40 = scalar_select %p39, 0, %s38
      %s41 = ssub.s32 %s21, %s40
      %s42 = ssub.s32 %s22, %s36
      %s43 = sor.u32 %s41, %s42
      %p44 = scmp.eq.s32.totalorder %s43, 0
      %s46 = sadd.s32 %s45, 1
      %s47 = scalar_select %p44, %s45, %s46
      %p50 = pneg %p44
      %p51 = scmp.eq.s32.totalorder %s14, 1
      %p52 = por %p50, %p51
      %p53 = scmp.ne.s32.totalorder %s45, %s48
      %p54 = scmp.eq.s32.totalorder %s14, 0
      %p55 = por %p53, %p54
      %p56 = scmp.ne.s32.totalorder %s45, %s48
      %p57 = scmp.eq.s32.totalorder %s19, 1
      %p58 = por %p56, %p57
      %p59 = scmp.ne.s32.totalorder %s48, %s49
      %p60 = scmp.eq.s32.totalorder %s19, 0
      %p61 = por %p59, %p60
      %p62 = scmp.ne.s32.totalorder %s48, %s49
      %p63 = scmp.eq.s32.totalorder %s20, 1
      %p64 = por %p62, %p63
      %p66 = scmp.ne.s32.totalorder %s49, %s65
      %p67 = scmp.eq.s32.totalorder %s20, 0
      %p68 = por %p66, %p67
      %s69 = ssub.s32 %s21, %s40
      %s70 = ssub.s32 %s23, %s32
      %s71 = sor.u32 %s69, %s70
      %p72 = scmp.eq.s32.totalorder %s71, 0
      %s74 = sadd.s32 %s73, 1
      %s75 = scalar_select %p72, %s73, %s74
      %p78 = pneg %p72
      %p79 = scmp.eq.s32.totalorder %s14, 1
      %p80 = por %p78, %p79
      %p81 = scmp.ne.s32.totalorder %s73, %s76
      %p82 = scmp.eq.s32.totalorder %s14, 0
      %p83 = por %p81, %p82
      %p84 = scmp.ne.s32.totalorder %s73, %s76
      %p85 = scmp.eq.s32.totalorder %s19, 1
      %p86 = por %p84, %p85
      %p87 = scmp.ne.s32.totalorder %s76, %s77
      %p88 = scmp.eq.s32.totalorder %s19, 0
      %p89 = por %p87, %p88
      %p90 = scmp.ne.s32.totalorder %s76, %s77
      %p91 = scmp.eq.s32.totalorder %s20, 1
      %p92 = por %p90, %p91
      %p94 = scmp.ne.s32.totalorder %s77, %s93
      %p95 = scmp.eq.s32.totalorder %s20, 0
      %p96 = por %p94, %p95
      %s97 = ssub.s32 %s21, %s40
      %s98 = ssub.s32 %s23, %s32
      %s99 = sor.u32 %s97, %s98
      %p100 = scmp.eq.s32.totalorder %s99, 0
      %s102 = sadd.s32 %s101, 1
      %s103 = scalar_select %p100, %s101, %s102
      %p106 = pneg %p100
      %p107 = scmp.eq.s32.totalorder %s14, 1
      %p108 = por %p106, %p107
      %p109 = scmp.ne.s32.totalorder %s101, %s104
      %p110 = scmp.eq.s32.totalorder %s14, 0
      %p111 = por %p109, %p110
      %p112 = scmp.ne.s32.totalorder %s101, %s104
      %p113 = scmp.eq.s32.totalorder %s19, 1
      %p114 = por %p112, %p113
      %p115 = scmp.ne.s32.totalorder %s104, %s105
      %p116 = scmp.eq.s32.totalorder %s19, 0
      %p117 = por %p115, %p116
      %p118 = scmp.ne.s32.totalorder %s104, %s105
      %p119 = scmp.eq.s32.totalorder %s20, 1
      %p120 = por %p118, %p119
      %p122 = scmp.ne.s32.totalorder %s105, %s121
      %p123 = scmp.eq.s32.totalorder %s20, 0
      %p124 = por %p122, %p123
      %s126 = sadd.s32 %s125, 1
      %p129 = scmp.eq.s32.totalorder %s14, 1
      %p130 = scmp.ne.s32.totalorder %s125, %s127
      %p131 = scmp.eq.s32.totalorder %s14, 0
      %p132 = por %p130, %p131
      %p133 = scmp.ne.s32.totalorder %s125, %s127
      %p134 = scmp.eq.s32.totalorder %s19, 1
      %p135 = por %p133, %p134
      %p136 = scmp.ne.s32.totalorder %s127, %s128
      %p137 = scmp.eq.s32.totalorder %s19, 0
      %p138 = por %p136, %p137
      %p139 = scmp.ne.s32.totalorder %s127, %s128
      %p140 = scmp.eq.s32.totalorder %s20, 1
      %p141 = por %p139, %p140
      %p143 = scmp.ne.s32.totalorder %s128, %s142
      %p144 = scmp.eq.s32.totalorder %s20, 0
      %p145 = por %p143, %p144
      %s147 = sadd.s32 %s146, 1
      %p150 = scmp.eq.s32.totalorder %s14, 1
      %p151 = scmp.ne.s32.totalorder %s146, %s148
      %p152 = scmp.eq.s32.totalorder %s14, 0
      %p153 = por %p151, %p152
      %p154 = scmp.ne.s32.totalorder %s146, %s148
      %p155 = scmp.eq.s32.totalorder %s19, 1
      %p156 = por %p154, %p155
      %p157 = scmp.ne.s32.totalorder %s148, %s149
      %p158 = scmp.eq.s32.totalorder %s19, 0
      %p159 = por %p157, %p158
      %p160 = scmp.ne.s32.totalorder %s148, %s149
      %p161 = scmp.eq.s32.totalorder %s20, 1
      %p162 = por %p160, %p161
      %p164 = scmp.ne.s32.totalorder %s149, %s163
      %p165 = scmp.eq.s32.totalorder %s20, 0
      %p166 = por %p164, %p165
      %s167 = ssub.s32 %s21, %s40
      %s168 = ssub.s32 %s22, %s36
      %s169 = sor.u32 %s167, %s168
      %p170 = scmp.eq.s32.totalorder %s169, 0
      %s172 = sadd.s32 %s171, 1
      %s173 = scalar_select %p170, %s171, %s172
      %p176 = pneg %p170
      %p177 = scmp.eq.s32.totalorder %s14, 1
      %p178 = por %p176, %p177
      %p179 = scmp.ne.s32.totalorder %s171, %s174
      %p180 = scmp.eq.s32.totalorder %s14, 0
      %p181 = por %p179, %p180
      %p182 = scmp.ne.s32.totalorder %s171, %s174
      %p183 = scmp.eq.s32.totalorder %s19, 1
      %p184 = por %p182, %p183
      %p185 = scmp.ne.s32.totalorder %s174, %s175
      %p186 = scmp.eq.s32.totalorder %s19, 0
      %p187 = por %p185, %p186
      %p188 = scmp.ne.s32.totalorder %s174, %s175
      %p189 = scmp.eq.s32.totalorder %s20, 1
      %p190 = por %p188, %p189
      %p192 = scmp.ne.s32.totalorder %s175, %s191
      %p193 = scmp.eq.s32.totalorder %s20, 0
      %p194 = por %p192, %p193
      %p195 = scmp.le.s32.totalorder 1, %s14
      %p196 = scmp.lt.s32.totalorder %s14, 3
      %p197 = pnand %p195, %p196
      %p198 = pneg %p197
      // Predicated region
      $region9: #{multihead_attention.3} parent=5 // pred_check
        _
      $region10: #{multihead_attention.3} parent=5 // pred_check_branch
        %200 = sbr.rel (%p197) target = $region12
      $region11: #{multihead_attention.3} parent=5 // pred_region
        %s201 = ssub.s32 %s14, 1
        // Predicated region
        $region13: #{multihead_attention.3} parent=11 // pred_check
          %p202 = pneg %p138
        $region14: #{multihead_attention.3} parent=11 // pred_check_branch
          %204 = sbr.rel (%p202) target = $region16
        $region15: #{multihead_attention.3} parent=11 // pred_region
          _
        $region16: #{multihead_attention.3} parent=11 // pred_fallthru
          _
        // Predicated region
        $region17: #{multihead_attention.3} parent=11 // pred_check
          %p205 = pneg %p159
        $region18: #{multihead_attention.3} parent=11 // pred_check_branch
          %207 = sbr.rel (%p205) target = $region20
        $region19: #{multihead_attention.3} parent=11 // pred_region
          _
        $region20: #{multihead_attention.3} parent=11 // pred_fallthru
          _
      $region12: #{multihead_attention.3} parent=5 // pred_fallthru
        _
      %p208 = scmp.lt.s32.totalorder %s14, 2
      // Predicated region
      $region21: #{multihead_attention.3} parent=5 // pred_check
        %p209 = pneg %p208
      $region22: #{multihead_attention.3} parent=5 // pred_check_branch
        %211 = sbr.rel (%p209) target = $region24
      $region23: #{multihead_attention.3} parent=5 // pred_region
        // Predicated region
        $region25: #{multihead_attention.3} parent=23 // pred_check
          %p212 = pneg %p55
        $region26: #{multihead_attention.3} parent=23 // pred_check_branch
          %214 = sbr.rel (%p212) target = $region28
        $region27: #{multihead_attention.3} parent=23 // pred_region
          %p215 = scmp.lt.s32.totalorder %s21, 1
          %s216 = scalar_select %p215, %s21, 1
          %p217 = scmp.lt.s32.totalorder %s22, 0
          %s218 = scalar_select %p217, %s22, 0
          %s219 = smul.addr %s218, 3
          %s220 = smul.addr %s216, 3
          %s221 = sadd.s32 %s219, %s220
          %s222 = smul.addr %s221, 4
          %s223 = scalar_lea.vmem %s0, %s222
        $region28: #{multihead_attention.3} parent=23 // pred_fallthru
          _
        // Predicated region
        $region29: #{multihead_attention.3} parent=23 // pred_check
          %p224 = pneg %p83
        $region30: #{multihead_attention.3} parent=23 // pred_check_branch
          %226 = sbr.rel (%p224) target = $region32
        $region31: #{multihead_attention.3} parent=23 // pred_region
          %p227 = scmp.lt.s32.totalorder %s21, 1
          %s228 = scalar_select %p227, %s21, 1
          %p229 = scmp.lt.s32.totalorder %s23, 0
          %s230 = scalar_select %p229, %s23, 0
          %s231 = smul.addr %s230, 3
          %s232 = sadd.s32 1, %s231
          %s233 = smul.addr %s228, 3
          %s234 = sadd.s32 %s232, %s233
          %s235 = smul.addr %s234, 4
          %s236 = scalar_lea.vmem %s1, %s235
        $region32: #{multihead_attention.3} parent=23 // pred_fallthru
          _
        // Predicated region
        $region33: #{multihead_attention.3} parent=23 // pred_check
          %p237 = pneg %p111
        $region34: #{multihead_attention.3} parent=23 // pred_check_branch
          %239 = sbr.rel (%p237) target = $region36
        $region35: #{multihead_attention.3} parent=23 // pred_region
          %p240 = scmp.lt.s32.totalorder %s21, 1
          %s241 = scalar_select %p240, %s21, 1
          %p242 = scmp.lt.s32.totalorder %s23, 0
          %s243 = scalar_select %p242, %s23, 0
          %s244 = smul.addr %s243, 3
          %s245 = sadd.s32 2, %s244
          %s246 = smul.addr %s241, 3
          %s247 = sadd.s32 %s245, %s246
          %s248 = smul.addr %s247, 4
          %s249 = scalar_lea.vmem %s2, %s248
        $region36: #{multihead_attention.3} parent=23 // pred_fallthru
          _
      $region24: #{multihead_attention.3} parent=5 // pred_fallthru
        _
      %p250 = scmp.le.s32.totalorder 1, %s14
      %p251 = scmp.lt.s32.totalorder %s14, 3
      %p252 = pnand %p250, %p251
      %p253 = pneg %p252
      // Predicated region
      $region37: #{multihead_attention.3} parent=5 // pred_check
        _
      $region38: #{multihead_attention.3} parent=5 // pred_check_branch
        %255 = sbr.rel (%p252) target = $region40
      $region39: #{multihead_attention.3} parent=5 // pred_region
        %s256 = ssub.s32 %s14, 1
        %p257 = scmp.lt.s32.totalorder %s24, 1
        %s258 = scalar_select %p257, %s24, 1
        %p259 = scmp.lt.s32.totalorder %s25, 0
        %s260 = scalar_select %p259, %s25, 0
        %s261 = smul.addr %s260, 3
        %s262 = smul.addr %s258, 3
        %s263 = sadd.s32 %s261, %s262
        %s264 = smul.addr %s263, 4
        %s265 = scalar_lea.vmem %s0, %s264
        %p266 = pneg %p61
        %p267 = pneg %p58
        %p268 = scmp.lt.s32.totalorder %s24, 1
        %s269 = scalar_select %p268, %s24, 1
        %p270 = scmp.lt.s32.totalorder %s26, 0
        %s271 = scalar_select %p270, %s26, 0
        %s272 = smul.addr %s271, 3
        %s273 = sadd.s32 1, %s272
        %s274 = smul.addr %s269, 3
        %s275 = sadd.s32 %s273, %s274
        %s276 = smul.addr %s275, 4
        %s277 = scalar_lea.vmem %s1, %s276
        %p278 = pneg %p89
        %p279 = pneg %p86
        %p280 = scmp.lt.s32.totalorder %s24, 1
        %s281 = scalar_select %p280, %s24, 1
        %p282 = scmp.lt.s32.totalorder %s26, 0
        %s283 = scalar_select %p282, %s26, 0
        %s284 = smul.addr %s283, 3
        %s285 = sadd.s32 2, %s284
        %s286 = smul.addr %s281, 3
        %s287 = sadd.s32 %s285, %s286
        %s288 = smul.addr %s287, 4
        %s289 = scalar_lea.vmem %s2, %s288
        %p290 = pneg %p117
        %p291 = pneg %p114
        %p292 = pneg %p138
        %p293 = pneg %p135
        %p294 = pneg %p159
        %p295 = pneg %p156
        %p296 = pneg %p187
        %p297 = pneg %p184
        %s298 = sand.u32 %s174, 1
        %s299 = scalar_lea.sflag [#allocation6], %s298
        %s300 = sand.u32 %s174, 1
        %s301 = smul.addr %s300, 8
        %s302 = scalar_lea.vmem [#allocation5], %s301
        %p303 = scmp.lt.s32.totalorder %s24, 1
        %s304 = scalar_select %p303, %s24, 1
        %p305 = scmp.lt.s32.totalorder %s25, 0
        %s306 = scalar_select %p305, %s25, 0
        %s307 = smul.addr %s306, 3
        %s308 = smul.addr %s304, 3
        %s309 = sadd.s32 %s307, %s308
        %s310 = smul.addr %s309, 4
        %s311 = scalar_lea.vmem %s0, %s310
        %p312 = scmp.lt.s32.totalorder %s24, 1
        %s313 = scalar_select %p312, %s24, 1
        %p314 = scmp.lt.s32.totalorder %s26, 0
        %s315 = scalar_select %p314, %s26, 0
        %s316 = smul.addr %s315, 3
        %s317 = sadd.s32 1, %s316
        %s318 = smul.addr %s313, 3
        %s319 = sadd.s32 %s317, %s318
        %s320 = smul.addr %s319, 4
        %s321 = scalar_lea.vmem %s1, %s320
        %p322 = scmp.lt.s32.totalorder %s24, 1
        %s323 = scalar_select %p322, %s24, 1
        %p324 = scmp.lt.s32.totalorder %s26, 0
        %s325 = scalar_select %p324, %s26, 0
        %s326 = smul.addr %s325, 3
        %s327 = sadd.s32 2, %s326
        %s328 = smul.addr %s323, 3
        %s329 = sadd.s32 %s327, %s328
        %s330 = smul.addr %s329, 4
        %s331 = scalar_lea.vmem %s2, %s330
        %p334 = scmp.eq.s32.totalorder %s26, 0
        // Predicated region
        $region41: #{multihead_attention.3} parent=39 // pred_check
          %p335 = pneg %p334
        $region42: #{multihead_attention.3} parent=39 // pred_check_branch
          %337 = sbr.rel (%p335) target = $region44
        $region43: #{multihead_attention.3} parent=39 // pred_region
          %vm338 = vcmask 31744
          %339 = vst.msk [vmem:[#allocation2] sm:$0xff] %vm338, -inf
          %340 = vst.msk [vmem:[#allocation3] sm:$0xff] %vm338, 0.0
          %vm341 = vcmask 261120
          %342 = vst.msk [vmem:[#allocation4] sm:$0xff] %vm341, 0.0
          %343 = vst.msk [vmem:[#allocation4 + $0x8] sm:$0xff] %vm341, 0.0
          %344 = vst.msk [vmem:[#allocation4 + $0x10] sm:$0xff] %vm341, 0.0
          %345 = vst.msk [vmem:[#allocation4 + $0x18] sm:$0xff] %vm341, 0.0
        $region44: #{multihead_attention.3} parent=39 // pred_fallthru
          _
        %v346 = vld [vmem:[%s311] sm:$0xf]
        %v347 = vld [vmem:[%s321] sm:$0xf]
        %v348 = vld [vmem:[%s331] sm:$0xf]
        %v349 = vmul.bf16 %v346, 1043676725
        %vm350 = vcmask 261120
        %v352 = vsel %vm350, %v349, 0
        %v355 = vsel %vm350, %v347, 0
        %357 = vmatprep.subr.bf16.mxu0 0
        %358 = vmatpush1.bf16.xpose.msra.mxu0 0
        %359 = vmatprep.subr.bf16.mxu0 0
        %360 = vmatpush1.bf16.xpose.msra.mxu0 0
        %361 = vmatprep.subr.bf16.mxu0 0
        %362 = vmatpush1.bf16.xpose.msra.mxu0 0
        %363 = vmatprep.subr.bf16.mxu0 0
        %364 = vmatpush1.bf16.xpose.msra.mxu0 0
        %365 = vmatprep.subr.bf16.mxu0 0
        %366 = vmatpush1.bf16.xpose.msra.mxu0 0
        %367 = vmatprep.subr.bf16.mxu0 0
        %368 = vmatpush1.bf16.xpose.msra.mxu0 0
        %369 = vmatprep.subr.bf16.mxu0 0
        %370 = vmatpush1.bf16.xpose.msra.mxu0 0
        %371 = vmatprep.subr.bf16.mxu0 0
        %372 = vmatpush1.bf16.xpose.msra.mxu0 %v355
        %373 = vmatprep.subr.bf16.mxu0 0
        %374 = vmatpush2.bf16.xpose.msra.mxu0 0
        %375 = vmatprep.subr.bf16.mxu0 0
        %376 = vmatpush2.bf16.xpose.msra.mxu0 0
        %377 = vmatprep.subr.bf16.mxu0 0
        %378 = vmatpush2.bf16.xpose.msra.mxu0 0
        %379 = vmatprep.subr.bf16.mxu0 0
        %380 = vmatpush2.bf16.xpose.msra.mxu0 0
        %381 = vmatprep.subr.bf16.mxu0 0
        %382 = vmatpush2.bf16.xpose.msra.mxu0 0
        %383 = vmatprep.subr.bf16.mxu0 0
        %384 = vmatpush2.bf16.xpose.msra.mxu0 0
        %385 = vmatprep.subr.bf16.mxu0 0
        %386 = vmatpush2.bf16.xpose.msra.mxu0 0
        %387 = vmatprep.subr.bf16.mxu0 0
        %388 = vmatpush2.bf16.xpose.msra.mxu0 0
        %389 = vmatprep.mubr.bf16.mxu0 0
        %390 = vmatmul.mubr.bf16.gmra.mxu0 %v352
        %v391 = vpop.f32.mrf.mxu0
        %v392 = vadd.f32 0.0, %v391
        %v393 = vpop.f32.mrf.mxu0
        %v394 = vpop.f32.mrf.mxu0
        %v395 = vpop.f32.mrf.mxu0
        %396 = vdwg.mxu0
        %v397 = vld [vmem:[#allocation2] sm:$0xff]
        %vm398 = vcmask 64512
        %v399 = vsel %vm398, %v392, -inf
        %400 = vmax.xlane.f32.xlu0 %v399
        %v401 = vpop.xlane.xlu0 %400
        %v402 = vmax.f32 %v397, %v401
        %v403 = vsub.f32 %v397, %v402
        %v404 = vmul.f32 %v403, 1.442695
        %v405 = vpow.pop %v404
        %407 = vset.pattern.permute.xlu0 0
        %408 = vperm.xlu0 %407, %v402
        %v409 = vpop.permute.xlu0 %408
        %v411 = vsub.f32 %v392, %v409
        %v412 = vmul.f32 %v411, 1.442695
        %v413 = vpow.pop %v412
        %v414 = vld [vmem:[#allocation3] sm:$0xff]
        %v415 = vmul.f32 %v405, %v414
        %v416 = vsel %vm398, %v413, 0.0
        %417 = vadd.xlane.f32.xlu0 %v416
        %v418 = vpop.xlane.xlu0 %417
        %v419 = vadd.f32 %v415, %v418
        %vm420 = vcmask 7168
        %421 = vst.msk [vmem:[#allocation3] sm:$0xff] %vm420, %v419
        %v422 = vld [vmem:[#allocation4] sm:$0xff]
        %424 = vset.pattern.permute.xlu0 0
        %425 = vperm.xlu0 %424, %v405
        %v426 = vpop.permute.xlu0 %425
        %v428 = vmul.f32 %v426, %v422
        %v429 = vpack.c.bf16 %v413, %v413
        %v431 = vsel %vm398, %v429, 0
        %vm433 = vcmask 1043456
        %v435 = vsel %vm433, %v348, 0
        %437 = vmatprep.subr.bf16.mxu0 0
        %438 = vmatpush1.bf16.msra.mxu0 0
        %439 = vmatprep.subr.bf16.mxu0 0
        %440 = vmatpush1.bf16.msra.mxu0 0
        %441 = vmatprep.subr.bf16.mxu0 0
        %442 = vmatpush1.bf16.msra.mxu0 0
        %443 = vmatprep.subr.bf16.mxu0 0
        %444 = vmatpush1.bf16.msra.mxu0 0
        %445 = vmatprep.subr.bf16.mxu0 0
        %446 = vmatpush1.bf16.msra.mxu0 0
        %447 = vmatprep.subr.bf16.mxu0 0
        %448 = vmatpush1.bf16.msra.mxu0 0
        %449 = vmatprep.subr.bf16.mxu0 0
        %450 = vmatpush1.bf16.msra.mxu0 0
        %451 = vmatprep.subr.bf16.mxu0 0
        %452 = vmatpush1.bf16.msra.mxu0 %v435
        %453 = vmatprep.subr.bf16.mxu0 0
        %454 = vmatpush2.bf16.msra.mxu0 0
        %455 = vmatprep.subr.bf16.mxu0 0
        %456 = vmatpush2.bf16.msra.mxu0 0
        %457 = vmatprep.subr.bf16.mxu0 0
        %458 = vmatpush2.bf16.msra.mxu0 0
        %459 = vmatprep.subr.bf16.mxu0 0
        %460 = vmatpush2.bf16.msra.mxu0 0
        %461 = vmatprep.subr.bf16.mxu0 0
        %462 = vmatpush2.bf16.msra.mxu0 0
        %463 = vmatprep.subr.bf16.mxu0 0
        %464 = vmatpush2.bf16.msra.mxu0 0
        %465 = vmatprep.subr.bf16.mxu0 0
        %466 = vmatpush2.bf16.msra.mxu0 0
        %467 = vmatprep.subr.bf16.mxu0 0
        %468 = vmatpush2.bf16.msra.mxu0 0
        %469 = vmatprep.mubr.bf16.mxu0 0
        %470 = vmatmul.mubr.bf16.gmra.mxu0 %v431
        %v471 = vpop.f32.mrf.mxu0
        %v472 = vadd.f32 0.0, %v471
        %v473 = vpop.f32.mrf.mxu0
        %v474 = vpop.f32.mrf.mxu0
        %v475 = vpop.f32.mrf.mxu0
        %476 = vdwg.mxu0
        %v477 = vadd.f32 %v428, %v472
        %478 = vst.msk [vmem:[#allocation4] sm:$0xff] %vm350, %v477
        %479 = vst.msk [vmem:[#allocation2] sm:$0xff] %vm420, %v402
        %v481 = vunpack.c.l.b16 %v349
        %v482 = vpack.c.b16 %v481, %v481
        %483 = vrot.lane.b32.xlu0 %v482, 96
        %v484 = vpop.permute.xlu0 %483
        %v486 = vunpack.c.l.b16 %v347
        %v487 = vpack.c.b16 %v486, %v486
        %488 = vrot.lane.b32.xlu0 %v487, 96
        %v489 = vpop.permute.xlu0 %488
        %v491 = vsel %vm350, %v484, 0
        %v494 = vsel %vm350, %v489, 0
        %496 = vmatprep.subr.bf16.mxu0 0
        %497 = vmatpush1.bf16.xpose.msra.mxu0 0
        %498 = vmatprep.subr.bf16.mxu0 0
        %499 = vmatpush1.bf16.xpose.msra.mxu0 0
        %500 = vmatprep.subr.bf16.mxu0 0
        %501 = vmatpush1.bf16.xpose.msra.mxu0 0
        %502 = vmatprep.subr.bf16.mxu0 0
        %503 = vmatpush1.bf16.xpose.msra.mxu0 0
        %504 = vmatprep.subr.bf16.mxu0 0
        %505 = vmatpush1.bf16.xpose.msra.mxu0 0
        %506 = vmatprep.subr.bf16.mxu0 0
        %507 = vmatpush1.bf16.xpose.msra.mxu0 0
        %508 = vmatprep.subr.bf16.mxu0 0
        %509 = vmatpush1.bf16.xpose.msra.mxu0 0
        %510 = vmatprep.subr.bf16.mxu0 0
        %511 = vmatpush1.bf16.xpose.msra.mxu0 %v494
        %512 = vmatprep.subr.bf16.mxu0 0
        %513 = vmatpush2.bf16.xpose.msra.mxu0 0
        %514 = vmatprep.subr.bf16.mxu0 0
        %515 = vmatpush2.bf16.xpose.msra.mxu0 0
        %516 = vmatprep.subr.bf16.mxu0 0
        %517 = vmatpush2.bf16.xpose.msra.mxu0 0
        %518 = vmatprep.subr.bf16.mxu0 0
        %519 = vmatpush2.bf16.xpose.msra.mxu0 0
        %520 = vmatprep.subr.bf16.mxu0 0
        %521 = vmatpush2.bf16.xpose.msra.mxu0 0
        %522 = vmatprep.subr.bf16.mxu0 0
        %523 = vmatpush2.bf16.xpose.msra.mxu0 0
        %524 = vmatprep.subr.bf16.mxu0 0
        %525 = vmatpush2.bf16.xpose.msra.mxu0 0
        %526 = vmatprep.subr.bf16.mxu0 0
        %527 = vmatpush2.bf16.xpose.msra.mxu0 0
        %528 = vmatprep.mubr.bf16.mxu0 0
        %529 = vmatmul.mubr.bf16.gmra.mxu0 %v491
        %v530 = vpop.f32.mrf.mxu0
        %v531 = vadd.f32 0.0, %v530
        %v532 = vpop.f32.mrf.mxu0
        %v533 = vpop.f32.mrf.mxu0
        %v534 = vpop.f32.mrf.mxu0
        %535 = vdwg.mxu0
        %v536 = vld [vmem:[#allocation2] sm:$0xff]
        %v537 = vsel %vm398, %v531, -inf
        %538 = vmax.xlane.f32.xlu0 %v537
        %v539 = vpop.xlane.xlu0 %538
        %v540 = vmax.f32 %v536, %v539
        %v541 = vsub.f32 %v536, %v540
        %v542 = vmul.f32 %v541, 1.442695
        %v543 = vpow.pop %v542
        %545 = vset.pattern.permute.xlu0 1
        %546 = vperm.xlu0 %545, %v540
        %v547 = vpop.permute.xlu0 %546
        %v549 = vsub.f32 %v531, %v547
        %v550 = vmul.f32 %v549, 1.442695
        %v551 = vpow.pop %v550
        %v552 = vld [vmem:[#allocation3] sm:$0xff]
        %v553 = vmul.f32 %v543, %v552
        %v554 = vsel %vm398, %v551, 0.0
        %555 = vadd.xlane.f32.xlu0 %v554
        %v556 = vpop.xlane.xlu0 %555
        %v557 = vadd.f32 %v553, %v556
        %vm558 = vcmask 15368
        %559 = vst.msk [vmem:[#allocation3] sm:$0xff] %vm558, %v557
        %s560 = scalar_lea.vmem [#allocation4], 8
        %v561 = vld [vmem:[%s560] sm:$0xff]
        %563 = vset.pattern.permute.xlu0 1
        %564 = vperm.xlu0 %563, %v543
        %v565 = vpop.permute.xlu0 %564
        %v567 = vmul.f32 %v565, %v561
        %v568 = vpack.c.bf16 %v551, %v551
        %v570 = vunpack.c.l.b16 %v348
        %v571 = vpack.c.b16 %v570, %v570
        %572 = vrot.lane.b32.xlu0 %v571, 96
        %v573 = vpop.permute.xlu0 %572
        %v575 = vsel %vm398, %v568, 0
        %v578 = vsel %vm433, %v573, 0
        %580 = vmatprep.subr.bf16.mxu0 0
        %581 = vmatpush1.bf16.msra.mxu0 0
        %582 = vmatprep.subr.bf16.mxu0 0
        %583 = vmatpush1.bf16.msra.mxu0 0
        %584 = vmatprep.subr.bf16.mxu0 0
        %585 = vmatpush1.bf16.msra.mxu0 0
        %586 = vmatprep.subr.bf16.mxu0 0
        %587 = vmatpush1.bf16.msra.mxu0 0
        %588 = vmatprep.subr.bf16.mxu0 0
        %589 = vmatpush1.bf16.msra.mxu0 0
        %590 = vmatprep.subr.bf16.mxu0 0
        %591 = vmatpush1.bf16.msra.mxu0 0
        %592 = vmatprep.subr.bf16.mxu0 0
        %593 = vmatpush1.bf16.msra.mxu0 0
        %594 = vmatprep.subr.bf16.mxu0 0
        %595 = vmatpush1.bf16.msra.mxu0 %v578
        %596 = vmatprep.subr.bf16.mxu0 0
        %597 = vmatpush2.bf16.msra.mxu0 0
        %598 = vmatprep.subr.bf16.mxu0 0
        %599 = vmatpush2.bf16.msra.mxu0 0
        %600 = vmatprep.subr.bf16.mxu0 0
        %601 = vmatpush2.bf16.msra.mxu0 0
        %602 = vmatprep.subr.bf16.mxu0 0
        %603 = vmatpush2.bf16.msra.mxu0 0
        %604 = vmatprep.subr.bf16.mxu0 0
        %605 = vmatpush2.bf16.msra.mxu0 0
        %606 = vmatprep.subr.bf16.mxu0 0
        %607 = vmatpush2.bf16.msra.mxu0 0
        %608 = vmatprep.subr.bf16.mxu0 0
        %609 = vmatpush2.bf16.msra.mxu0 0
        %610 = vmatprep.subr.bf16.mxu0 0
        %611 = vmatpush2.bf16.msra.mxu0 0
        %612 = vmatprep.mubr.bf16.mxu0 0
        %613 = vmatmul.mubr.bf16.gmra.mxu0 %v575
        %v614 = vpop.f32.mrf.mxu0
        %v615 = vadd.f32 0.0, %v614
        %v616 = vpop.f32.mrf.mxu0
        %v617 = vpop.f32.mrf.mxu0
        %v618 = vpop.f32.mrf.mxu0
        %619 = vdwg.mxu0
        %v620 = vadd.f32 %v567, %v615
        %621 = vst.msk [vmem:[%s560] sm:$0xff] %vm350, %v620
        %622 = vst.msk [vmem:[#allocation2] sm:$0xff] %vm558, %v540
        %623 = vrot.lane.b32.xlu0 %v482, 64
        %v624 = vpop.permute.xlu0 %623
        %625 = vrot.lane.b32.xlu0 %v487, 64
        %v626 = vpop.permute.xlu0 %625
        %v628 = vsel %vm350, %v624, 0
        %v631 = vsel %vm350, %v626, 0
        %633 = vmatprep.subr.bf16.mxu0 0
        %634 = vmatpush1.bf16.xpose.msra.mxu0 0
        %635 = vmatprep.subr.bf16.mxu0 0
        %636 = vmatpush1.bf16.xpose.msra.mxu0 0
        %637 = vmatprep.subr.bf16.mxu0 0
        %638 = vmatpush1.bf16.xpose.msra.mxu0 0
        %639 = vmatprep.subr.bf16.mxu0 0
        %640 = vmatpush1.bf16.xpose.msra.mxu0 0
        %641 = vmatprep.subr.bf16.mxu0 0
        %642 = vmatpush1.bf16.xpose.msra.mxu0 0
        %643 = vmatprep.subr.bf16.mxu0 0
        %644 = vmatpush1.bf16.xpose.msra.mxu0 0
        %645 = vmatprep.subr.bf16.mxu0 0
        %646 = vmatpush1.bf16.xpose.msra.mxu0 0
        %647 = vmatprep.subr.bf16.mxu0 0
        %648 = vmatpush1.bf16.xpose.msra.mxu0 %v631
        %649 = vmatprep.subr.bf16.mxu0 0
        %650 = vmatpush2.bf16.xpose.msra.mxu0 0
        %651 = vmatprep.subr.bf16.mxu0 0
        %652 = vmatpush2.bf16.xpose.msra.mxu0 0
        %653 = vmatprep.subr.bf16.mxu0 0
        %654 = vmatpush2.bf16.xpose.msra.mxu0 0
        %655 = vmatprep.subr.bf16.mxu0 0
        %656 = vmatpush2.bf16.xpose.msra.mxu0 0
        %657 = vmatprep.subr.bf16.mxu0 0
        %658 = vmatpush2.bf16.xpose.msra.mxu0 0
        %659 = vmatprep.subr.bf16.mxu0 0
        %660 = vmatpush2.bf16.xpose.msra.mxu0 0
        %661 = vmatprep.subr.bf16.mxu0 0
        %662 = vmatpush2.bf16.xpose.msra.mxu0 0
        %663 = vmatprep.subr.bf16.mxu0 0
        %664 = vmatpush2.bf16.xpose.msra.mxu0 0
        %665 = vmatprep.mubr.bf16.mxu0 0
        %666 = vmatmul.mubr.bf16.gmra.mxu0 %v628
        %v667 = vpop.f32.mrf.mxu0
        %v668 = vadd.f32 0.0, %v667
        %v669 = vpop.f32.mrf.mxu0
        %v670 = vpop.f32.mrf.mxu0
        %v671 = vpop.f32.mrf.mxu0
        %672 = vdwg.mxu0
        %v673 = vld [vmem:[#allocation2] sm:$0xff]
        %v674 = vsel %vm398, %v668, -inf
        %675 = vmax.xlane.f32.xlu0 %v674
        %v676 = vpop.xlane.xlu0 %675
        %v677 = vmax.f32 %v673, %v676
        %v678 = vsub.f32 %v673, %v677
        %v679 = vmul.f32 %v678, 1.442695
        %v680 = vpow.pop %v679
        %682 = vset.pattern.permute.xlu0 2
        %683 = vperm.xlu0 %682, %v677
        %v684 = vpop.permute.xlu0 %683
        %v686 = vsub.f32 %v668, %v684
        %v687 = vmul.f32 %v686, 1.442695
        %v688 = vpow.pop %v687
        %v689 = vld [vmem:[#allocation3] sm:$0xff]
        %v690 = vmul.f32 %v680, %v689
        %v691 = vsel %vm398, %v688, 0.0
        %692 = vadd.xlane.f32.xlu0 %v691
        %v693 = vpop.xlane.xlu0 %692
        %v694 = vadd.f32 %v690, %v693
        %vm695 = vcmask 23568
        %696 = vst.msk [vmem:[#allocation3] sm:$0xff] %vm695, %v694
        %s697 = scalar_lea.vmem [#allocation4], 16
        %v698 = vld [vmem:[%s697] sm:$0xff]
        %700 = vset.pattern.permute.xlu0 2
        %701 = vperm.xlu0 %700, %v680
        %v702 = vpop.permute.xlu0 %701
        %v704 = vmul.f32 %v702, %v698
        %v705 = vpack.c.bf16 %v688, %v688
        %706 = vrot.lane.b32.xlu0 %v571, 64
        %v707 = vpop.permute.xlu0 %706
        %v709 = vsel %vm398, %v705, 0
        %v712 = vsel %vm433, %v707, 0
        %714 = vmatprep.subr.bf16.mxu0 0
        %715 = vmatpush1.bf16.msra.mxu0 0
        %716 = vmatprep.subr.bf16.mxu0 0
        %717 = vmatpush1.bf16.msra.mxu0 0
        %718 = vmatprep.subr.bf16.mxu0 0
        %719 = vmatpush1.bf16.msra.mxu0 0
        %720 = vmatprep.subr.bf16.mxu0 0
        %721 = vmatpush1.bf16.msra.mxu0 0
        %722 = vmatprep.subr.bf16.mxu0 0
        %723 = vmatpush1.bf16.msra.mxu0 0
        %724 = vmatprep.subr.bf16.mxu0 0
        %725 = vmatpush1.bf16.msra.mxu0 0
        %726 = vmatprep.subr.bf16.mxu0 0
        %727 = vmatpush1.bf16.msra.mxu0 0
        %728 = vmatprep.subr.bf16.mxu0 0
        %729 = vmatpush1.bf16.msra.mxu0 %v712
        %730 = vmatprep.subr.bf16.mxu0 0
        %731 = vmatpush2.bf16.msra.mxu0 0
        %732 = vmatprep.subr.bf16.mxu0 0
        %733 = vmatpush2.bf16.msra.mxu0 0
        %734 = vmatprep.subr.bf16.mxu0 0
        %735 = vmatpush2.bf16.msra.mxu0 0
        %736 = vmatprep.subr.bf16.mxu0 0
        %737 = vmatpush2.bf16.msra.mxu0 0
        %738 = vmatprep.subr.bf16.mxu0 0
        %739 = vmatpush2.bf16.msra.mxu0 0
        %740 = vmatprep.subr.bf16.mxu0 0
        %741 = vmatpush2.bf16.msra.mxu0 0
        %742 = vmatprep.subr.bf16.mxu0 0
        %743 = vmatpush2.bf16.msra.mxu0 0
        %744 = vmatprep.subr.bf16.mxu0 0
        %745 = vmatpush2.bf16.msra.mxu0 0
        %746 = vmatprep.mubr.bf16.mxu0 0
        %747 = vmatmul.mubr.bf16.gmra.mxu0 %v709
        %v748 = vpop.f32.mrf.mxu0
        %v749 = vadd.f32 0.0, %v748
        %v750 = vpop.f32.mrf.mxu0
        %v751 = vpop.f32.mrf.mxu0
        %v752 = vpop.f32.mrf.mxu0
        %753 = vdwg.mxu0
        %v754 = vadd.f32 %v704, %v749
        %755 = vst.msk [vmem:[%s697] sm:$0xff] %vm350, %v754
        %756 = vst.msk [vmem:[#allocation2] sm:$0xff] %vm695, %v677
        %757 = vrot.lane.b32.xlu0 %v482, 32
        %v758 = vpop.permute.xlu0 %757
        %759 = vrot.lane.b32.xlu0 %v487, 32
        %v760 = vpop.permute.xlu0 %759
        %v762 = vsel %vm350, %v758, 0
        %v765 = vsel %vm350, %v760, 0
        %767 = vmatprep.subr.bf16.mxu0 0
        %768 = vmatpush1.bf16.xpose.msra.mxu0 0
        %769 = vmatprep.subr.bf16.mxu0 0
        %770 = vmatpush1.bf16.xpose.msra.mxu0 0
        %771 = vmatprep.subr.bf16.mxu0 0
        %772 = vmatpush1.bf16.xpose.msra.mxu0 0
        %773 = vmatprep.subr.bf16.mxu0 0
        %774 = vmatpush1.bf16.xpose.msra.mxu0 0
        %775 = vmatprep.subr.bf16.mxu0 0
        %776 = vmatpush1.bf16.xpose.msra.mxu0 0
        %777 = vmatprep.subr.bf16.mxu0 0
        %778 = vmatpush1.bf16.xpose.msra.mxu0 0
        %779 = vmatprep.subr.bf16.mxu0 0
        %780 = vmatpush1.bf16.xpose.msra.mxu0 0
        %781 = vmatprep.subr.bf16.mxu0 0
        %782 = vmatpush1.bf16.xpose.msra.mxu0 %v765
        %783 = vmatprep.subr.bf16.mxu0 0
        %784 = vmatpush2.bf16.xpose.msra.mxu0 0
        %785 = vmatprep.subr.bf16.mxu0 0
        %786 = vmatpush2.bf16.xpose.msra.mxu0 0
        %787 = vmatprep.subr.bf16.mxu0 0
        %788 = vmatpush2.bf16.xpose.msra.mxu0 0
        %789 = vmatprep.subr.bf16.mxu0 0
        %790 = vmatpush2.bf16.xpose.msra.mxu0 0
        %791 = vmatprep.subr.bf16.mxu0 0
        %792 = vmatpush2.bf16.xpose.msra.mxu0 0
        %793 = vmatprep.subr.bf16.mxu0 0
        %794 = vmatpush2.bf16.xpose.msra.mxu0 0
        %795 = vmatprep.subr.bf16.mxu0 0
        %796 = vmatpush2.bf16.xpose.msra.mxu0 0
        %797 = vmatprep.subr.bf16.mxu0 0
        %798 = vmatpush2.bf16.xpose.msra.mxu0 0
        %799 = vmatprep.mubr.bf16.mxu0 0
        %800 = vmatmul.mubr.bf16.gmra.mxu0 %v762
        %v801 = vpop.f32.mrf.mxu0
        %v802 = vadd.f32 0.0, %v801
        %v803 = vpop.f32.mrf.mxu0
        %v804 = vpop.f32.mrf.mxu0
        %v805 = vpop.f32.mrf.mxu0
        %806 = vdwg.mxu0
        %v807 = vld [vmem:[#allocation2] sm:$0xff]
        %v808 = vsel %vm398, %v802, -inf
        %809 = vmax.xlane.f32.xlu0 %v808
        %v810 = vpop.xlane.xlu0 %809
        %v811 = vmax.f32 %v807, %v810
        %v812 = vsub.f32 %v807, %v811
        %v813 = vmul.f32 %v812, 1.442695
        %v814 = vpow.pop %v813
        %816 = vset.pattern.permute.xlu0 3
        %817 = vperm.xlu0 %816, %v811
        %v818 = vpop.permute.xlu0 %817
        %v820 = vsub.f32 %v802, %v818
        %v821 = vmul.f32 %v820, 1.442695
        %v822 = vpow.pop %v821
        %v823 = vld [vmem:[#allocation3] sm:$0xff]
        %v824 = vmul.f32 %v814, %v823
        %v825 = vsel %vm398, %v822, 0.0
        %826 = vadd.xlane.f32.xlu0 %v825
        %v827 = vpop.xlane.xlu0 %826
        %v828 = vadd.f32 %v824, %v827
        %vm829 = vcmask 31768
        %830 = vst.msk [vmem:[#allocation3] sm:$0xff] %vm829, %v828
        %s831 = scalar_lea.vmem [#allocation4], 24
        %v832 = vld [vmem:[%s831] sm:$0xff]
        %834 = vset.pattern.permute.xlu0 3
        %835 = vperm.xlu0 %834, %v814
        %v836 = vpop.permute.xlu0 %835
        %v838 = vmul.f32 %v836, %v832
        %v839 = vpack.c.bf16 %v822, %v822
        %840 = vrot.lane.b32.xlu0 %v571, 32
        %v841 = vpop.permute.xlu0 %840
        %v843 = vsel %vm398, %v839, 0
        %v846 = vsel %vm433, %v841, 0
        %848 = vmatprep.subr.bf16.mxu0 0
        %849 = vmatpush1.bf16.msra.mxu0 0
        %850 = vmatprep.subr.bf16.mxu0 0
        %851 = vmatpush1.bf16.msra.mxu0 0
        %852 = vmatprep.subr.bf16.mxu0 0
        %853 = vmatpush1.bf16.msra.mxu0 0
        %854 = vmatprep.subr.bf16.mxu0 0
        %855 = vmatpush1.bf16.msra.mxu0 0
        %856 = vmatprep.subr.bf16.mxu0 0
        %857 = vmatpush1.bf16.msra.mxu0 0
        %858 = vmatprep.subr.bf16.mxu0 0
        %859 = vmatpush1.bf16.msra.mxu0 0
        %860 = vmatprep.subr.bf16.mxu0 0
        %861 = vmatpush1.bf16.msra.mxu0 0
        %862 = vmatprep.subr.bf16.mxu0 0
        %863 = vmatpush1.bf16.msra.mxu0 %v846
        %864 = vmatprep.subr.bf16.mxu0 0
        %865 = vmatpush2.bf16.msra.mxu0 0
        %866 = vmatprep.subr.bf16.mxu0 0
        %867 = vmatpush2.bf16.msra.mxu0 0
        %868 = vmatprep.subr.bf16.mxu0 0
        %869 = vmatpush2.bf16.msra.mxu0 0
        %870 = vmatprep.subr.bf16.mxu0 0
        %871 = vmatpush2.bf16.msra.mxu0 0
        %872 = vmatprep.subr.bf16.mxu0 0
        %873 = vmatpush2.bf16.msra.mxu0 0
        %874 = vmatprep.subr.bf16.mxu0 0
        %875 = vmatpush2.bf16.msra.mxu0 0
        %876 = vmatprep.subr.bf16.mxu0 0
        %877 = vmatpush2.bf16.msra.mxu0 0
        %878 = vmatprep.subr.bf16.mxu0 0
        %879 = vmatpush2.bf16.msra.mxu0 0
        %880 = vmatprep.mubr.bf16.mxu0 0
        %881 = vmatmul.mubr.bf16.gmra.mxu0 %v843
        %v882 = vpop.f32.mrf.mxu0
        %v883 = vadd.f32 0.0, %v882
        %v884 = vpop.f32.mrf.mxu0
        %v885 = vpop.f32.mrf.mxu0
        %v886 = vpop.f32.mrf.mxu0
        %887 = vdwg.mxu0
        %v888 = vadd.f32 %v838, %v883
        %889 = vst.msk [vmem:[%s831] sm:$0xff] %vm350, %v888
        %890 = vst.msk [vmem:[#allocation2] sm:$0xff] %vm829, %v811
        // Predicated region
        $region45: #{multihead_attention.3} parent=39 // pred_check
          %p891 = pneg %p334
        $region46: #{multihead_attention.3} parent=39 // pred_check_branch
          %893 = sbr.rel (%p891) target = $region48
        $region47: #{multihead_attention.3} parent=39 // pred_region
          %v894 = vld [vmem:[#allocation3] sm:$0xff]
          %v895 = vrcp.pop %v894
          %v896 = vld [vmem:[#allocation4] sm:$0xff]
          %898 = vset.pattern.permute.xlu0 0
          %899 = vperm.xlu0 %898, %v895
          %v900 = vpop.permute.xlu0 %899
          %v902 = vmul.f32 %v896, %v900
          %v903 = vpack.c.bf16 %v902, %v902
          %v904 = vld [vmem:[%s3] sm:$0xf]
          %v905 = vld [vmem:[%s3 + $0x4] sm:$0xf]
          %v906 = vld [vmem:[%s3 + $0x8] sm:$0xf]
          %v907 = vld [vmem:[%s3 + $0xc] sm:$0xf]
          %v908 = vld [vmem:[%s560] sm:$0xff]
          %909 = vset.pattern.permute.xlu0 1
          %910 = vperm.xlu0 %909, %v895
          %v911 = vpop.permute.xlu0 %910
          %v913 = vmul.f32 %v908, %v911
          %v914 = vpack.c.bf16 %v913, %v913
          %v915 = vld [vmem:[%s3 + $0x10] sm:$0xf]
          %v916 = vld [vmem:[%s3 + $0x14] sm:$0xf]
          %v917 = vld [vmem:[%s3 + $0x18] sm:$0xf]
          %v918 = vld [vmem:[%s3 + $0x1c] sm:$0xf]
          %v923 = vunpack.c.l.b16 %v915
          %v924 = vunpack.c.l.b16 %v916
          %v925 = vunpack.c.l.b16 %v917
          %v926 = vunpack.c.l.b16 %v918
          %v927 = vpack.c.b16 %v924, %v923
          %v928 = vpack.c.b16 %v926, %v925
          %v932 = vsel %vm350, %v914, 0
          %934 = vmatprep.subr.bf16.mxu0 0
          %935 = vmatpush1.bf16.msra.mxu0 0
          %936 = vmatprep.subr.bf16.mxu0 0
          %937 = vmatpush1.bf16.msra.mxu0 0
          %938 = vmatprep.subr.bf16.mxu0 0
          %939 = vmatpush1.bf16.msra.mxu0 0
          %940 = vmatprep.subr.bf16.mxu0 0
          %941 = vmatpush1.bf16.msra.mxu0 0
          %942 = vmatprep.subr.bf16.mxu0 0
          %943 = vmatpush1.bf16.msra.mxu0 0
          %944 = vmatprep.subr.bf16.mxu0 0
          %945 = vmatpush1.bf16.msra.mxu0 0
          %946 = vmatprep.subr.bf16.mxu0 0
          %947 = vmatpush1.bf16.msra.mxu0 %v928
          %948 = vmatprep.subr.bf16.mxu0 0
          %949 = vmatpush1.bf16.msra.mxu0 %v927
          %950 = vmatprep.subr.bf16.mxu0 0
          %951 = vmatpush2.bf16.msra.mxu0 0
          %952 = vmatprep.subr.bf16.mxu0 0
          %953 = vmatpush2.bf16.msra.mxu0 0
          %954 = vmatprep.subr.bf16.mxu0 0
          %955 = vmatpush2.bf16.msra.mxu0 0
          %956 = vmatprep.subr.bf16.mxu0 0
          %957 = vmatpush2.bf16.msra.mxu0 0
          %958 = vmatprep.subr.bf16.mxu0 0
          %959 = vmatpush2.bf16.msra.mxu0 0
          %960 = vmatprep.subr.bf16.mxu0 0
          %961 = vmatpush2.bf16.msra.mxu0 0
          %962 = vmatprep.subr.bf16.mxu0 0
          %963 = vmatpush2.bf16.msra.mxu0 0
          %964 = vmatprep.subr.bf16.mxu0 0
          %965 = vmatpush2.bf16.msra.mxu0 0
          %966 = vmatprep.mubr.bf16.mxu0 0
          %967 = vmatmul.mubr.bf16.gmra.mxu0 %v932
          %v968 = vpop.f32.mrf.mxu0
          %v969 = vadd.f32 0.0, %v968
          %v970 = vpop.f32.mrf.mxu0
          %v971 = vpop.f32.mrf.mxu0
          %v972 = vpop.f32.mrf.mxu0
          %973 = vdwg.mxu0
          %v978 = vunpack.c.l.b16 %v904
          %v979 = vunpack.c.l.b16 %v905
          %v980 = vunpack.c.l.b16 %v906
          %v981 = vunpack.c.l.b16 %v907
          %v982 = vpack.c.b16 %v979, %v978
          %v983 = vpack.c.b16 %v981, %v980
          %v987 = vsel %vm350, %v903, 0
          %989 = vmatprep.subr.bf16.mxu0 0
          %990 = vmatpush1.bf16.msra.mxu0 0
          %991 = vmatprep.subr.bf16.mxu0 0
          %992 = vmatpush1.bf16.msra.mxu0 0
          %993 = vmatprep.subr.bf16.mxu0 0
          %994 = vmatpush1.bf16.msra.mxu0 0
          %995 = vmatprep.subr.bf16.mxu0 0
          %996 = vmatpush1.bf16.msra.mxu0 0
          %997 = vmatprep.subr.bf16.mxu0 0
          %998 = vmatpush1.bf16.msra.mxu0 0
          %999 = vmatprep.subr.bf16.mxu0 0
          %1000 = vmatpush1.bf16.msra.mxu0 0
          %1001 = vmatprep.subr.bf16.mxu0 0
          %1002 = vmatpush1.bf16.msra.mxu0 %v983
          %1003 = vmatprep.subr.bf16.mxu0 0
          %1004 = vmatpush1.bf16.msra.mxu0 %v982
          %1005 = vmatprep.subr.bf16.mxu0 0
          %1006 = vmatpush2.bf16.msra.mxu0 0
          %1007 = vmatprep.subr.bf16.mxu0 0
          %1008 = vmatpush2.bf16.msra.mxu0 0
          %1009 = vmatprep.subr.bf16.mxu0 0
          %1010 = vmatpush2.bf16.msra.mxu0 0
          %1011 = vmatprep.subr.bf16.mxu0 0
          %1012 = vmatpush2.bf16.msra.mxu0 0
          %1013 = vmatprep.subr.bf16.mxu0 0
          %1014 = vmatpush2.bf16.msra.mxu0 0
          %1015 = vmatprep.subr.bf16.mxu0 0
          %1016 = vmatpush2.bf16.msra.mxu0 0
          %1017 = vmatprep.subr.bf16.mxu0 0
          %1018 = vmatpush2.bf16.msra.mxu0 0
          %1019 = vmatprep.subr.bf16.mxu0 0
          %1020 = vmatpush2.bf16.msra.mxu0 0
          %1021 = vmatprep.mubr.bf16.mxu0 0
          %1022 = vmatmul.mubr.bf16.gmra.mxu0 %v987
          %v1023 = vpop.f32.mrf.mxu0
          %v1024 = vadd.f32 %v969, %v1023
          %v1025 = vpop.f32.mrf.mxu0
          %v1026 = vpop.f32.mrf.mxu0
          %v1027 = vpop.f32.mrf.mxu0
          %1028 = vdwg.mxu0
          %v1029 = vld [vmem:[%s697] sm:$0xff]
          %1030 = vset.pattern.permute.xlu0 2
          %1031 = vperm.xlu0 %1030, %v895
          %v1032 = vpop.permute.xlu0 %1031
          %v1034 = vmul.f32 %v1029, %v1032
          %v1035 = vpack.c.bf16 %v1034, %v1034
          %v1036 = vld [vmem:[%s3 + $0x20] sm:$0xf]
          %v1037 = vld [vmem:[%s3 + $0x24] sm:$0xf]
          %v1038 = vld [vmem:[%s3 + $0x28] sm:$0xf]
          %v1039 = vld [vmem:[%s3 + $0x2c] sm:$0xf]
          %v1044 = vunpack.c.l.b16 %v1036
          %v1045 = vunpack.c.l.b16 %v1037
          %v1046 = vunpack.c.l.b16 %v1038
          %v1047 = vunpack.c.l.b16 %v1039
          %v1048 = vpack.c.b16 %v1045, %v1044
          %v1049 = vpack.c.b16 %v1047, %v1046
          %v1053 = vsel %vm350, %v1035, 0
          %1055 = vmatprep.subr.bf16.mxu0 0
          %1056 = vmatpush1.bf16.msra.mxu0 0
          %1057 = vmatprep.subr.bf16.mxu0 0
          %1058 = vmatpush1.bf16.msra.mxu0 0
          %1059 = vmatprep.subr.bf16.mxu0 0
          %1060 = vmatpush1.bf16.msra.mxu0 0
          %1061 = vmatprep.subr.bf16.mxu0 0
          %1062 = vmatpush1.bf16.msra.mxu0 0
          %1063 = vmatprep.subr.bf16.mxu0 0
          %1064 = vmatpush1.bf16.msra.mxu0 0
          %1065 = vmatprep.subr.bf16.mxu0 0
          %1066 = vmatpush1.bf16.msra.mxu0 0
          %1067 = vmatprep.subr.bf16.mxu0 0
          %1068 = vmatpush1.bf16.msra.mxu0 %v1049
          %1069 = vmatprep.subr.bf16.mxu0 0
          %1070 = vmatpush1.bf16.msra.mxu0 %v1048
          %1071 = vmatprep.subr.bf16.mxu0 0
          %1072 = vmatpush2.bf16.msra.mxu0 0
          %1073 = vmatprep.subr.bf16.mxu0 0
          %1074 = vmatpush2.bf16.msra.mxu0 0
          %1075 = vmatprep.subr.bf16.mxu0 0
          %1076 = vmatpush2.bf16.msra.mxu0 0
          %1077 = vmatprep.subr.bf16.mxu0 0
          %1078 = vmatpush2.bf16.msra.mxu0 0
          %1079 = vmatprep.subr.bf16.mxu0 0
          %1080 = vmatpush2.bf16.msra.mxu0 0
          %1081 = vmatprep.subr.bf16.mxu0 0
          %1082 = vmatpush2.bf16.msra.mxu0 0
          %1083 = vmatprep.subr.bf16.mxu0 0
          %1084 = vmatpush2.bf16.msra.mxu0 0
          %1085 = vmatprep.subr.bf16.mxu0 0
          %1086 = vmatpush2.bf16.msra.mxu0 0
          %1087 = vmatprep.mubr.bf16.mxu0 0
          %1088 = vmatmul.mubr.bf16.gmra.mxu0 %v1053
          %v1089 = vpop.f32.mrf.mxu0
          %v1090 = vadd.f32 0.0, %v1089
          %v1091 = vpop.f32.mrf.mxu0
          %v1092 = vpop.f32.mrf.mxu0
          %v1093 = vpop.f32.mrf.mxu0
          %1094 = vdwg.mxu0
          %v1095 = vadd.f32 %v1024, %v1090
          %v1096 = vld [vmem:[%s831] sm:$0xff]
          %1097 = vset.pattern.permute.xlu0 3
          %1098 = vperm.xlu0 %1097, %v895
          %v1099 = vpop.permute.xlu0 %1098
          %v1101 = vmul.f32 %v1096, %v1099
          %v1102 = vpack.c.bf16 %v1101, %v1101
          %v1103 = vld [vmem:[%s3 + $0x30] sm:$0xf]
          %v1104 = vld [vmem:[%s3 + $0x34] sm:$0xf]
          %v1105 = vld [vmem:[%s3 + $0x38] sm:$0xf]
          %v1106 = vld [vmem:[%s3 + $0x3c] sm:$0xf]
          %v1111 = vunpack.c.l.b16 %v1103
          %v1112 = vunpack.c.l.b16 %v1104
          %v1113 = vunpack.c.l.b16 %v1105
          %v1114 = vunpack.c.l.b16 %v1106
          %v1115 = vpack.c.b16 %v1112, %v1111
          %v1116 = vpack.c.b16 %v1114, %v1113
          %v1120 = vsel %vm350, %v1102, 0
          %1122 = vmatprep.subr.bf16.mxu0 0
          %1123 = vmatpush1.bf16.msra.mxu0 0
          %1124 = vmatprep.subr.bf16.mxu0 0
          %1125 = vmatpush1.bf16.msra.mxu0 0
          %1126 = vmatprep.subr.bf16.mxu0 0
          %1127 = vmatpush1.bf16.msra.mxu0 0
          %1128 = vmatprep.subr.bf16.mxu0 0
          %1129 = vmatpush1.bf16.msra.mxu0 0
          %1130 = vmatprep.subr.bf16.mxu0 0
          %1131 = vmatpush1.bf16.msra.mxu0 0
          %1132 = vmatprep.subr.bf16.mxu0 0
          %1133 = vmatpush1.bf16.msra.mxu0 0
          %1134 = vmatprep.subr.bf16.mxu0 0
          %1135 = vmatpush1.bf16.msra.mxu0 %v1116
          %1136 = vmatprep.subr.bf16.mxu0 0
          %1137 = vmatpush1.bf16.msra.mxu0 %v1115
          %1138 = vmatprep.subr.bf16.mxu0 0
          %1139 = vmatpush2.bf16.msra.mxu0 0
          %1140 = vmatprep.subr.bf16.mxu0 0
          %1141 = vmatpush2.bf16.msra.mxu0 0
          %1142 = vmatprep.subr.bf16.mxu0 0
          %1143 = vmatpush2.bf16.msra.mxu0 0
          %1144 = vmatprep.subr.bf16.mxu0 0
          %1145 = vmatpush2.bf16.msra.mxu0 0
          %1146 = vmatprep.subr.bf16.mxu0 0
          %1147 = vmatpush2.bf16.msra.mxu0 0
          %1148 = vmatprep.subr.bf16.mxu0 0
          %1149 = vmatpush2.bf16.msra.mxu0 0
          %1150 = vmatprep.subr.bf16.mxu0 0
          %1151 = vmatpush2.bf16.msra.mxu0 0
          %1152 = vmatprep.subr.bf16.mxu0 0
          %1153 = vmatpush2.bf16.msra.mxu0 0
          %1154 = vmatprep.mubr.bf16.mxu0 0
          %1155 = vmatmul.mubr.bf16.gmra.mxu0 %v1120
          %v1156 = vpop.f32.mrf.mxu0
          %v1157 = vadd.f32 0.0, %v1156
          %v1158 = vpop.f32.mrf.mxu0
          %v1159 = vpop.f32.mrf.mxu0
          %v1160 = vpop.f32.mrf.mxu0
          %1161 = vdwg.mxu0
          %v1162 = vadd.f32 %v1095, %v1157
          %v1163 = vld [vmem:[%s4] sm:$0x1]
          %v1165 = vlaneseq
          %v1166 = vshrl.u32 %v1165, 7
          %v1167 = vsub.s32 0, %v1166
          %v1168 = vrot.slane %v1163, %v1167
          %v1170 = vadd.f32 %v1162, %v1168
          %1171 = vst [vmem:[%s302] sm:$0xff] %v1170
        $region48: #{multihead_attention.3} parent=39 // pred_fallthru
          _
        %s1172 = sand.u32 %s174, 1
        %s1173 = scalar_lea.sflag [#allocation6], %s1172
        %s1174 = sand.u32 %s174, 1
        %s1175 = smul.addr %s1174, 8
        %s1176 = scalar_lea.vmem [#allocation5], %s1175
        // Predicated region
        $region49: #{multihead_attention.3} parent=39 // pred_check
          %p1177 = pneg %p184
        $region50: #{multihead_attention.3} parent=39 // pred_check_branch
          %1179 = sbr.rel (%p1177) target = $region52
        $region51: #{multihead_attention.3} parent=39 // pred_region
          %s1181 = ssub.s32 128, 128
          %1182 = vsyncadd %s1173, %s1181
          %s1183 = sadd.s32 %s25, %s24
          %s1184 = smul.addr %s1183, 128
          %s1185 = scalar_lea.hbm %s5, %s1184
          %s1187 = sshll.u32 %s1176, 4
          %s1188 = int_to_ptr.vmem [resolvable:$true] %s1187
          %1190 = dma.vmem_to_hbm [thread:$0]  %s1188, 128, %s1185, %s1173
        $region52: #{multihead_attention.3} parent=39 // pred_fallthru
          _
      $region40: #{multihead_attention.3} parent=5 // pred_fallthru
        _
      %p1191 = scmp.le.s32.totalorder 2, %s14
      // Predicated region
      $region53: #{multihead_attention.3} parent=5 // pred_check
        %p1192 = pneg %p1191
      $region54: #{multihead_attention.3} parent=5 // pred_check_branch
        %1194 = sbr.rel (%p1192) target = $region56
      $region55: #{multihead_attention.3} parent=5 // pred_region
        %s1195 = ssub.s32 %s14, 2
        // Predicated region
        $region57: #{multihead_attention.3} parent=55 // pred_check
          %p1196 = pneg %p190
        $region58: #{multihead_attention.3} parent=55 // pred_check_branch
          %1198 = sbr.rel (%p1196) target = $region60
        $region59: #{multihead_attention.3} parent=55 // pred_region
          %s1199 = sand.u32 %s175, 1
          %s1200 = scalar_lea.sflag [#allocation6], %s1199
          %s1201 = sand.u32 %s175, 1
          %s1202 = smul.addr %s1201, 8
          %s1203 = scalar_lea.vmem [#allocation5], %s1202
          %1204 = dma.done %s1200, 128
        $region60: #{multihead_attention.3} parent=55 // pred_fallthru
          _
      $region56: #{multihead_attention.3} parent=5 // pred_fallthru
        _
    $region6: #{multihead_attention.3} parent=1 // loop_footer
      %s18 = sadd.s32 1, %s14
    $region7: #{multihead_attention.3} parent=1 // loop_footer_branch
      %13 = sbr.rel target = $region3
    $region8: #{multihead_attention.3} parent=1 // loop_exit
      _
    %1205 = vsyncpa [#allocation6], 1
    %s1206 = scalar_lea.sflag [#allocation6], 1
    %1207 = vsyncpa %s1206, 1

</llo_original>
